<compile_context>
chip_gen: v7x
topology: tpu7x:2x2x1
jax: 0.10.0
libtpu: 0.0.40
codegen_flags: <defaults>
</compile_context>

<pallas_src>
import math

import numpy as np
import jax
import jax.numpy as jnp
from jax.experimental import pallas as pl
from jax.experimental.pallas import tpu as pltpu

_LANE = 128
_SUBLANE = 8


def _ffenc_kernel(w_ref, phase_ref, coords_ref, out_ref):
    """out = sin(coords @ W + phase).

    w_ref:      (K*R, K*OUT)  block-diagonal 2*pi*freq selection matrix (f32)
    phase_ref:  (1,   K*OUT)  0 on sin columns, pi/2 on cos columns     (f32)
    coords_ref: (TM,  K*R)    folded coordinate row tile
    out_ref:    (TM,  K*OUT)  lane-dense output tile (K*OUT % 128 == 0)
    """
    coords = coords_ref[...].astype(jnp.float32)
    # Full-f32 MXU matmul (tiny K, lane-dense N); phase add folds cos into sin.
    ang = jnp.dot(
        coords,
        w_ref[...],
        preferred_element_type=jnp.float32,
        precision=jax.lax.Precision.HIGHEST,
    )
    ang = ang + phase_ref[...]
    # f32 sin on the EUP; cast only at the store (keeps v5e EUP work minimal).
    out_ref[...] = jnp.sin(ang).astype(out_ref.dtype)


def _pick_row_tile(n_rows, row_bytes, tm_cap=2048,
                   block_vmem_budget=12 * 1024 * 1024):
    """Pick a sublane-aligned row tile (in folded rows).

    Largest tile whose double-buffered (input + output) blocks fit the budget
    (safe on v5e/v6e/v7x scoped VMEM), while keeping >= 2 grid steps whenever
    there is enough work so v7x's two TensorCores shard the parallel axis.
    """
    cap = block_vmem_budget // (2 * row_bytes)
    cap = max(_SUBLANE, (min(tm_cap, cap) // _SUBLANE) * _SUBLANE)
    steps = max(2, -(-n_rows // cap))          # prefer at least 2 grid steps
    tm = -(-n_rows // steps)
    tm = ((tm + _SUBLANE - 1) // _SUBLANE) * _SUBLANE
    return max(_SUBLANE, min(tm, cap))


class FourierFeatureEncodingPositionalPallas:
    """Deterministic Pallas TPU re-implementation of the PyTorch module."""

    def __init__(self, in_features, num_frequencies=20, scale=1):
        self.in_features = int(in_features)
        self.num_frequencies = int(num_frequencies)
        self.scale = scale
        self.out_dim = 2 * self.in_features * self.num_frequencies

        # torch.range(0, N-1) is endpoint-inclusive -> length N.
        exps = np.arange(self.num_frequencies, dtype=np.float64) / self.num_frequencies
        freqs = np.float64(scale) ** exps                         # (F,)
        self.frequencies = jnp.asarray(freqs, jnp.float32)        # reference path only

        r, f, d = self.in_features, self.num_frequencies, self.out_dim
        two_pi_f = (2.0 * np.pi * freqs).astype(np.float32)

        # Base (R, out_dim) weight / (out_dim,) phase reproducing the
        # torch.cat((sin, cos), -1).reshape(..., R*2F) column ordering:
        # row r -> columns [r*2F : r*2F+F] = sin, [r*2F+F : (r+1)*2F] = cos.
        w_base = np.zeros((r, d), np.float32)
        p_base = np.zeros((d,), np.float32)
        for j in range(r):
            w_base[j, j * 2 * f: j * 2 * f + f] = two_pi_f           # sin block
            w_base[j, j * 2 * f + f: (j + 1) * 2 * f] = two_pi_f     # cos block
            p_base[j * 2 * f + f: (j + 1) * 2 * f] = 0.5 * np.pi     # cos = sin(x + pi/2)

        # Fold k rows into the lane axis so the output block width is a
        # multiple of 128 (unmasked, lane-dense stores).
        k = _LANE // math.gcd(d, _LANE)
        self.fold = k
        assert (k * d) % _LANE == 0
        self.w_fold = jnp.asarray(np.kron(np.eye(k, dtype=np.float32), w_base))
        self.phase_fold = jnp.asarray(np.tile(p_base, k)[None, :])

    def __call__(self, coords):
        r, d, k = self.in_features, self.out_dim, self.fold
        b = coords.shape[0]
        coords3 = coords.reshape(b, -1, r)                # (B, Q, R)
        q = coords3.shape[1]
        n = b * q

        flat = coords3.reshape(n, r)                      # (N, R)
        n_fold = -(-n // k)                               # folded rows (ceil)
        row_bytes = k * (r + d) * 4                       # in + out bytes / folded row
        tm = _pick_row_tile(n_fold, row_bytes)
        n_fold_pad = -(-n_fold // tm) * tm                # pad rows; never full-extent
        n_pad = n_fold_pad * k
        if n_pad != n:
            flat = jnp.concatenate(
                [flat, jnp.zeros((n_pad - n, r), flat.dtype)], axis=0)
        folded = flat.reshape(n_fold_pad, k * r)          # row-major HBM-side reshape

        kr, kd = k * r, k * d
        grid = (n_fold_pad // tm,)

        out_fold = pl.pallas_call(
            _ffenc_kernel,
            out_shape=jax.ShapeDtypeStruct((n_fold_pad, kd), coords.dtype),
            grid_spec=pltpu.PrefetchScalarGridSpec(
                num_scalar_prefetch=0,
                grid=grid,
                in_specs=[
                    pl.BlockSpec((kr, kd), lambda i: (0, 0)),    # W: resident block
                    pl.BlockSpec((1, kd), lambda i: (0, 0)),     # phase: resident block
                    pl.BlockSpec((tm, kr), lambda i: (i, 0)),    # coords row tile
                ],
                out_specs=pl.BlockSpec((tm, kd), lambda i: (i, 0)),
            ),
            compiler_params=pltpu.CompilerParams(
                dimension_semantics=("parallel",),
                vmem_limit_bytes=32 * 1024 * 1024,
            ),
        )(self.w_fold, self.phase_fold, folded)

        out_flat = out_fold.reshape(n_pad, d)[:n]         # un-fold + drop padding
        return out_flat.reshape(b, q, d)


def _reference(coords, frequencies, in_features, out_dim):
    """Pure-JAX reference mirroring the PyTorch forward."""
    c = coords.reshape(coords.shape[0], -1, in_features)
    cf = jnp.einsum('p,sqr->sqrp', frequencies, c)
    sin = jnp.sin(2.0 * jnp.pi * cf)
    cos = jnp.cos(2.0 * jnp.pi * cf)
    enc = jnp.concatenate([sin, cos], axis=-1)
    return enc.reshape(coords.shape[0], -1, out_dim)


if __name__ == "__main__":
    key = jax.random.PRNGKey(0)
    k1, k2 = jax.random.split(key)

    # Case 1: SPDER default config (in_features=2, F=20, scale=1).
    B, Q, R = 2, 64, 2
    coords = jax.random.uniform(k1, (B, Q, R), dtype=jnp.float32,
                                minval=-1.0, maxval=1.0)
    mod = FourierFeatureEncodingPositionalPallas(in_features=R,
                                                 num_frequencies=20, scale=1)
    out = jax.block_until_ready(mod(coords))
    ref = _reference(coords, mod.frequencies, R, mod.out_dim)
    assert out.shape == (B, Q, mod.out_dim), out.shape
    assert jnp.allclose(out, ref, atol=2e-5, rtol=2e-5), \
        float(jnp.max(jnp.abs(out - ref)))

    # Case 2: audio-style 1-D coords with distinct frequencies (scale=4) and a
    # ragged row count -> exercises column ordering and the row-padding path.
    B2, Q2, R2 = 3, 37, 1
    coords2 = jax.random.uniform(k2, (B2, Q2, R2), dtype=jnp.float32,
                                 minval=-1.0, maxval=1.0)
    mod2 = FourierFeatureEncodingPositionalPallas(in_features=R2,
                                                  num_frequencies=20, scale=4)
    out2 = jax.block_until_ready(mod2(coords2))
    ref2 = _reference(coords2, mod2.frequencies, R2, mod2.out_dim)
    assert out2.shape == (B2, Q2, mod2.out_dim), out2.shape
    assert jnp.allclose(out2, ref2, atol=5e-5, rtol=5e-5), \
        float(jnp.max(jnp.abs(out2 - ref2)))

    print("KERNEL_OK")
</pallas_src>

<mosaic_0001>
module attributes {stable_mosaic.version = 11 : i64} {
  func.func @_ffenc_kernel(%arg0: i32, %arg1: memref<16x640xf32, #tpu.memory_space<vmem>>, %arg2: memref<1x640xf32, #tpu.memory_space<vmem>>, %arg3: memref<8x16xf32, #tpu.memory_space<vmem>>, %arg4: memref<8x640xf32, #tpu.memory_space<vmem>>) attributes {dimension_semantics = [#tpu.dimension_semantics<parallel>], iteration_bounds = array<i64: 2>, scalar_prefetch = 0 : i64, scratch_operands = 0 : i64, tpu.core_type = #tpu.core_type<tc>, window_params = [{pipeline_mode = #tpu.pipeline_mode<synchronous>, transform_indices = @transform_0, window_bounds = array<i64: 16, 640>}, {pipeline_mode = #tpu.pipeline_mode<synchronous>, transform_indices = @transform_1, window_bounds = array<i64: 1, 640>}, {transform_indices = @transform_2, window_bounds = array<i64: 8, 16>}, {transform_indices = @transform_3, window_bounds = array<i64: 8, 640>}]} {
    %c0 = arith.constant 0 : index
    %c0_0 = arith.constant 0 : index
    %0 = vector.load %arg3[%c0, %c0_0] : memref<8x16xf32, #tpu.memory_space<vmem>>, vector<8x16xf32>
    %c0_1 = arith.constant 0 : index
    %c0_2 = arith.constant 0 : index
    %1 = vector.load %arg1[%c0_1, %c0_2] : memref<16x640xf32, #tpu.memory_space<vmem>>, vector<16x640xf32>
    %cst = arith.constant dense<0.000000e+00> : vector<8x640xf32>
    %2 = tpu.matmul %0, %1, %cst {dimension_numbers = #tpu.dot_dimension_numbers<[1], [0], [0], [1], [0, 0, 1, 1], [], []>, precision = #tpu.contract_precision<fp32>} : vector<8x16xf32>, vector<16x640xf32>, vector<8x640xf32> -> vector<8x640xf32>
    %c0_3 = arith.constant 0 : index
    %c0_4 = arith.constant 0 : index
    %3 = vector.load %arg2[%c0_3, %c0_4] : memref<1x640xf32, #tpu.memory_space<vmem>>, vector<1x640xf32>
    %4 = vector.broadcast %3 : vector<1x640xf32> to vector<8x640xf32>
    %5 = arith.addf %2, %4 : vector<8x640xf32>
    %6 = math.sin %5 : vector<8x640xf32>
    %c0_5 = arith.constant 0 : index
    %c0_6 = arith.constant 0 : index
    %7 = vector.load %arg4[%c0_5, %c0_6] : memref<8x640xf32, #tpu.memory_space<vmem>>, vector<8x640xf32>
    tpu.vector_store %arg4[%c0_5, %c0_6], %6 {strides = array<i32>} : memref<8x640xf32, #tpu.memory_space<vmem>>, vector<8x640xf32>,
    return
  }
  func.func @transform_0(%arg0: i32) -> (i32, i32) {
    %c0_i32 = arith.constant 0 : i32
    %c0_i32_0 = arith.constant 0 : i32
    %c0_i32_1 = arith.constant 0 : i32
    return %c0_i32, %c0_i32_0 : i32, i32
  }
  func.func @transform_1(%arg0: i32) -> (i32, i32) {
    %c0_i32 = arith.constant 0 : i32
    %c0_i32_0 = arith.constant 0 : i32
    %c0_i32_1 = arith.constant 0 : i32
    return %c0_i32, %c0_i32_0 : i32, i32
  }
  func.func @transform_2(%arg0: i32) -> (i32, i32) {
    %c0_i32 = arith.constant 0 : i32
    %c0_i32_0 = arith.constant 0 : i32
    return %arg0, %c0_i32 : i32, i32
  }
  func.func @transform_3(%arg0: i32) -> (i32, i32) {
    %c0_i32 = arith.constant 0 : i32
    %c0_i32_0 = arith.constant 0 : i32
    return %arg0, %c0_i32 : i32, i32
  }
}

</mosaic_0001>

<llo_original>
// kernel: tpu_custom_call.1
$region0: #{tpu_custom_call.1}
  #allocation0 [shape = 'u32[]', space=smem, size = 0x4, offset = 0x4, fixed_abs, tag = 'smem constant byte address 0x4 - core index']
  #allocation1 [shape = 'u32[144,128]{1,0:T(1,128)}', space=vmem, size = 0x12000, scoped, tag = 'internal scratch']
  %s0 = inlined_call_operand.hbm [shape: f32[16,640], index: 0, kind: input, shape index: {}]
  %s1 = inlined_call_operand.hbm [shape: f32[1,640], index: 1, kind: input, shape index: {}]
  %s2 = inlined_call_operand.hbm [shape: f32[16,16], index: 2, kind: input, shape index: {}]
  %s3 = inlined_call_operand.hbm [shape: f32[16,640], index: 3, kind: output, shape index: {}]
  %s4 = sld [smem:[#allocation0]]
  $region57: #{tpu_custom_call.1} parent=0
    _
  %s6 = ssub.s32 1, %s4
  %s7 = scalar_select 0, %s6, %s4
  $region1: #{tpu_custom_call.1} parent=0
    #allocation2 [shape = 'u8[40960]{0}', space=vmem, size = 0xa000, scoped, tag = 'input window, operand 0, single buffered']
    #allocation3 [shape = 's32[2]{0}', space=sflag, size = 0x8, scoped, tag = 'scoped memory for tpu_custom_call.1']
    #allocation4 [shape = 's32[2]{0}', space=sflag, size = 0x8, scoped, tag = 'scoped memory for tpu_custom_call.1']
    #allocation5 [shape = 'u8[2560]{0}', space=vmem, size = 0xc00, scoped, tag = 'input window, operand 1, single buffered']
    #allocation6 [shape = 's32[1]{0}', space=sflag, size = 0x4, scoped, tag = 'scoped memory for tpu_custom_call.1']
    #allocation7 [shape = 'u8[8192]{0}', space=vmem, size = 0x2000, scoped, tag = 'input window, operand 2']
    #allocation8 [shape = 'u8[40960]{0}', space=vmem, size = 0xa000, scoped, tag = 'output window, operand 0']
    %8 = vsyncpa [#allocation3], 0
    %9 = vsyncpa [#allocation6], 0
    %10 = vsyncpa [#allocation4], 0
    %s11 = scalar_lea.sflag [#allocation4], 1
    %12 = vsyncpa %s11, 0
    loop: start=0, step=1, limit=4
    $region2: #{tpu_custom_call.1} parent=1 // loop_pre_header
      _
    $region3: #{tpu_custom_call.1} parent=1 // loop_header
      %s14 = sphi 0, %s18
      %p15 = scmp.ge.s32.totalorder %s14, 4
      %s22 = sphi 0, %s22
      %s24 = sphi 0, %s22
      %s25 = sphi 0, %s24
      %s39 = sphi 0, %s25
      %s43 = sphi 0, %s43
      %s45 = sphi 0, %s43
      %s46 = sphi 0, %s45
      %s60 = sphi 0, %s46
      %s66 = sphi 0, %s68
      %s69 = sphi 0, %s66
      %s70 = sphi 0, %s69
      %s86 = sphi 0, %s70
      %s92 = sphi 0, %s94
      %s95 = sphi 0, %s92
      %s96 = sphi 0, %s95
      %s112 = sphi 0, %s96
    $region4: #{tpu_custom_call.1} parent=1 // loop_header_branch
      %17 = sbr.rel (%p15) target = $region8
    $region5: #{tpu_custom_call.1} parent=1 // loop_body
      %s19 = ssub.s32 %s14, 1
      %s20 = ssub.s32 %s14, 2
      %s21 = sadd.s32 %s14, 1
      %s23 = sadd.s32 %s22, 1
      %p26 = scmp.eq.s32.totalorder %s14, 1
      %p27 = scmp.ne.s32.totalorder %s22, %s24
      %p28 = scmp.eq.s32.totalorder %s14, 0
      %p29 = por %p27, %p28
      %p30 = scmp.ne.s32.totalorder %s22, %s24
      %p31 = scmp.eq.s32.totalorder %s19, 1
      %p32 = por %p30, %p31
      %p33 = scmp.ne.s32.totalorder %s24, %s25
      %p34 = scmp.eq.s32.totalorder %s19, 0
      %p35 = por %p33, %p34
      %p36 = scmp.ne.s32.totalorder %s24, %s25
      %p37 = scmp.eq.s32.totalorder %s20, 1
      %p38 = por %p36, %p37
      %p40 = scmp.ne.s32.totalorder %s25, %s39
      %p41 = scmp.eq.s32.totalorder %s20, 0
      %p42 = por %p40, %p41
      %s44 = sadd.s32 %s43, 1
      %p47 = scmp.eq.s32.totalorder %s14, 1
      %p48 = scmp.ne.s32.totalorder %s43, %s45
      %p49 = scmp.eq.s32.totalorder %s14, 0
      %p50 = por %p48, %p49
      %p51 = scmp.ne.s32.totalorder %s43, %s45
      %p52 = scmp.eq.s32.totalorder %s19, 1
      %p53 = por %p51, %p52
      %p54 = scmp.ne.s32.totalorder %s45, %s46
      %p55 = scmp.eq.s32.totalorder %s19, 0
      %p56 = por %p54, %p55
      %p57 = scmp.ne.s32.totalorder %s45, %s46
      %p58 = scmp.eq.s32.totalorder %s20, 1
      %p59 = por %p57, %p58
      %p61 = scmp.ne.s32.totalorder %s46, %s60
      %p62 = scmp.eq.s32.totalorder %s20, 0
      %p63 = por %p61, %p62
      %s64 = ssub.s32 %s14, %s21
      %p65 = scmp.eq.s32.totalorder %s64, 0
      %s67 = sadd.s32 %s66, 1
      %s68 = scalar_select %p65, %s66, %s67
      %p71 = pneg %p65
      %p72 = scmp.eq.s32.totalorder %s14, 1
      %p73 = por %p71, %p72
      %p74 = scmp.ne.s32.totalorder %s66, %s69
      %p75 = scmp.eq.s32.totalorder %s14, 0
      %p76 = por %p74, %p75
      %p77 = scmp.ne.s32.totalorder %s66, %s69
      %p78 = scmp.eq.s32.totalorder %s19, 1
      %p79 = por %p77, %p78
      %p80 = scmp.ne.s32.totalorder %s69, %s70
      %p81 = scmp.eq.s32.totalorder %s19, 0
      %p82 = por %p80, %p81
      %p83 = scmp.ne.s32.totalorder %s69, %s70
      %p84 = scmp.eq.s32.totalorder %s20, 1
      %p85 = por %p83, %p84
      %p87 = scmp.ne.s32.totalorder %s70, %s86
      %p88 = scmp.eq.s32.totalorder %s20, 0
      %p89 = por %p87, %p88
      %s90 = ssub.s32 %s14, %s21
      %p91 = scmp.eq.s32.totalorder %s90, 0
      %s93 = sadd.s32 %s92, 1
      %s94 = scalar_select %p91, %s92, %s93
      %p97 = pneg %p91
      %p98 = scmp.eq.s32.totalorder %s14, 1
      %p99 = por %p97, %p98
      %p100 = scmp.ne.s32.totalorder %s92, %s95
      %p101 = scmp.eq.s32.totalorder %s14, 0
      %p102 = por %p100, %p101
      %p103 = scmp.ne.s32.totalorder %s92, %s95
      %p104 = scmp.eq.s32.totalorder %s19, 1
      %p105 = por %p103, %p104
      %p106 = scmp.ne.s32.totalorder %s95, %s96
      %p107 = scmp.eq.s32.totalorder %s19, 0
      %p108 = por %p106, %p107
      %p109 = scmp.ne.s32.totalorder %s95, %s96
      %p110 = scmp.eq.s32.totalorder %s20, 1
      %p111 = por %p109, %p110
      %p113 = scmp.ne.s32.totalorder %s96, %s112
      %p114 = scmp.eq.s32.totalorder %s20, 0
      %p115 = por %p113, %p114
      %p116 = scmp.le.s32.totalorder 1, %s14
      %p117 = scmp.lt.s32.totalorder %s14, 3
      %p118 = pnand %p116, %p117
      %p119 = pneg %p118
      // Predicated region
      $region9: #{tpu_custom_call.1} parent=5 // pred_check
        _
      $region10: #{tpu_custom_call.1} parent=5 // pred_check_branch
        %121 = sbr.rel (%p118) target = $region12
      $region11: #{tpu_custom_call.1} parent=5 // pred_region
        %s122 = ssub.s32 %s14, 1
        // Predicated region
        $region13: #{tpu_custom_call.1} parent=11 // pred_check
          %p123 = pneg %p35
        $region14: #{tpu_custom_call.1} parent=11 // pred_check_branch
          %125 = sbr.rel (%p123) target = $region16
        $region15: #{tpu_custom_call.1} parent=11 // pred_region
          %s127 = ssub.s32 1280, 1280
          %128 = vsyncadd [#allocation3], %s127
          %s129 = sshll.u32 [#allocation2], 4
          %s130 = int_to_ptr.vmem [resolvable:$true] %s129
          %135 = dma.hbm_to_vmem [thread:$0]  %s0, 1280, %s130, [#allocation3], 640, 640, 40
        $region16: #{tpu_custom_call.1} parent=11 // pred_fallthru
          _
        // Predicated region
        $region17: #{tpu_custom_call.1} parent=11 // pred_check
          %p136 = pneg %p56
        $region18: #{tpu_custom_call.1} parent=11 // pred_check_branch
          %138 = sbr.rel (%p136) target = $region20
        $region19: #{tpu_custom_call.1} parent=11 // pred_region
          %s140 = ssub.s32 80, 80
          %141 = vsyncadd [#allocation6], %s140
          %s143 = sshll.u32 [#allocation5], 4
          %s144 = int_to_ptr.vmem [resolvable:$true] %s143
          %146 = dma.hbm_to_vmem [thread:$0]  %s1, 80, %s144, [#allocation6]
        $region20: #{tpu_custom_call.1} parent=11 // pred_fallthru
          _
      $region12: #{tpu_custom_call.1} parent=5 // pred_fallthru
        _
      %p147 = scmp.lt.s32.totalorder %s14, 2
      // Predicated region
      $region21: #{tpu_custom_call.1} parent=5 // pred_check
        %p148 = pneg %p147
      $region22: #{tpu_custom_call.1} parent=5 // pred_check_branch
        %150 = sbr.rel (%p148) target = $region24
      $region23: #{tpu_custom_call.1} parent=5 // pred_region
        // Predicated region
        $region25: #{tpu_custom_call.1} parent=23 // pred_check
          %p151 = pneg %p76
        $region26: #{tpu_custom_call.1} parent=23 // pred_check_branch
          %153 = sbr.rel (%p151) target = $region28
        $region27: #{tpu_custom_call.1} parent=23 // pred_region
          %s154 = sand.u32 %s14, 1
          %s155 = scalar_lea.sflag [#allocation3], %s154
          %s156 = sand.u32 %s66, 1
          %s157 = smul.addr %s156, 8
          %s158 = scalar_lea.vmem [#allocation7], %s157
          %s160 = ssub.s32 128, 128
          %161 = vsyncadd %s155, %s160
          %s162 = smul.addr %s14, 128
          %s163 = scalar_lea.hbm %s2, %s162
          %s165 = sshll.u32 %s158, 4
          %s166 = int_to_ptr.vmem [resolvable:$true] %s165
          %168 = dma.hbm_to_vmem [thread:$0]  %s163, 128, %s166, %s155
        $region28: #{tpu_custom_call.1} parent=23 // pred_fallthru
          _
      $region24: #{tpu_custom_call.1} parent=5 // pred_fallthru
        _
      %p169 = scmp.le.s32.totalorder 1, %s14
      %p170 = scmp.lt.s32.totalorder %s14, 3
      %p171 = pnand %p169, %p170
      %p172 = pneg %p171
      // Predicated region
      $region29: #{tpu_custom_call.1} parent=5 // pred_check
        _
      $region30: #{tpu_custom_call.1} parent=5 // pred_check_branch
        %174 = sbr.rel (%p171) target = $region32
      $region31: #{tpu_custom_call.1} parent=5 // pred_region
        %s175 = ssub.s32 %s14, 1
        // Predicated region
        $region33: #{tpu_custom_call.1} parent=31 // pred_check
          %p176 = pneg %p35
        $region34: #{tpu_custom_call.1} parent=31 // pred_check_branch
          %178 = sbr.rel (%p176) target = $region36
        $region35: #{tpu_custom_call.1} parent=31 // pred_region
          %179 = dma.done [#allocation3], 1280
        $region36: #{tpu_custom_call.1} parent=31 // pred_fallthru
          _
        // Predicated region
        $region37: #{tpu_custom_call.1} parent=31 // pred_check
          %p180 = pneg %p56
        $region38: #{tpu_custom_call.1} parent=31 // pred_check_branch
          %182 = sbr.rel (%p180) target = $region40
        $region39: #{tpu_custom_call.1} parent=31 // pred_region
          %183 = dma.done [#allocation6], 80
        $region40: #{tpu_custom_call.1} parent=31 // pred_fallthru
          _
        %s184 = sand.u32 %s19, 1
        %s185 = scalar_lea.sflag [#allocation3], %s184
        %s186 = sand.u32 %s69, 1
        %s187 = smul.addr %s186, 8
        %s188 = scalar_lea.vmem [#allocation7], %s187
        // Predicated region
        $region41: #{tpu_custom_call.1} parent=31 // pred_check
          %p189 = pneg %p82
        $region42: #{tpu_custom_call.1} parent=31 // pred_check_branch
          %191 = sbr.rel (%p189) target = $region44
        $region43: #{tpu_custom_call.1} parent=31 // pred_region
          %192 = dma.done %s185, 128
        $region44: #{tpu_custom_call.1} parent=31 // pred_fallthru
          _
        %p193 = pneg %p35
        %p194 = pneg %p32
        %p195 = pneg %p56
        %p196 = pneg %p53
        %s197 = sand.u32 %s19, 1
        %s198 = scalar_lea.sflag [#allocation3], %s197
        %s199 = sand.u32 %s69, 1
        %s200 = smul.addr %s199, 8
        %s201 = scalar_lea.vmem [#allocation7], %s200
        %p202 = pneg %p82
        %p203 = pneg %p79
        %p204 = pneg %p108
        %p205 = pneg %p105
        %s206 = sand.u32 %s95, 1
        %s207 = scalar_lea.sflag [#allocation4], %s206
        %s208 = sand.u32 %s95, 1
        %s209 = smul.addr %s208, 40
        %s210 = scalar_lea.vmem [#allocation8], %s209
        %v211 = vld [vmem:[%s188] sm:$0xff]
        %v212 = vld [vmem:[#allocation2] sm:$0xff]
        %v213 = vld [vmem:[#allocation2 + $0x8] sm:$0xff]
        %v214 = vld [vmem:[#allocation2 + $0x10] sm:$0xff]
        %v215 = vld [vmem:[#allocation2 + $0x18] sm:$0xff]
        %v216 = vld [vmem:[#allocation2 + $0x20] sm:$0xff]
        %v217 = vld [vmem:[#allocation2 + $0x28] sm:$0xff]
        %v218 = vld [vmem:[#allocation2 + $0x30] sm:$0xff]
        %v219 = vld [vmem:[#allocation2 + $0x38] sm:$0xff]
        %v220 = vld [vmem:[#allocation2 + $0x40] sm:$0xff]
        %v221 = vld [vmem:[#allocation2 + $0x48] sm:$0xff]
        %v222 = vld [vmem:[#allocation5] sm:$0x1f]
        %v224 = vlaneseq
        %v225 = vshrl.u32 %v224, 7
        %v226 = vsub.s32 0, %v225
        %v227 = vrot.slane %v222, %v226
        %v228 = vlaneseq
        %v229 = vshrl.u32 %v228, 7
        %v230 = vsub.s32 1, %v229
        %v231 = vrot.slane %v222, %v230
        %v232 = vlaneseq
        %v233 = vshrl.u32 %v232, 7
        %v234 = vsub.s32 2, %v233
        %v235 = vrot.slane %v222, %v234
        %v236 = vlaneseq
        %v237 = vshrl.u32 %v236, 7
        %v238 = vsub.s32 3, %v237
        %v239 = vrot.slane %v222, %v238
        %v240 = vlaneseq
        %v241 = vshrl.u32 %v240, 7
        %v242 = vsub.s32 4, %v241
        %v243 = vrot.slane %v222, %v242
        %vm249 = vcmask 130048
        %v251 = vsel %vm249, %v211, 0
        %v253 = vand.u32 %v213, 4294901760
        %254 = vmatprep.subr.mxu0 %v253
        %v255 = vand.u32 %v212, 4294901760
        %256 = vmatpush1.msra.mxu0 %v255
        %v257 = vand.u32 %v218, 4294901760
        %258 = vmatprep.subr.mxu0 %v257
        %v259 = vand.u32 %v217, 4294901760
        %260 = vmatpush1.msra.mxu0 %v259
        %261 = vmatprep.subr.mxu0 0.0
        %262 = vmatpush1.msra.mxu0 0.0
        %263 = vmatprep.subr.mxu0 0.0
        %264 = vmatpush1.msra.mxu0 0.0
        %265 = vmatprep.subr.mxu0 0.0
        %266 = vmatpush1.msra.mxu0 0.0
        %267 = vmatprep.subr.mxu0 0.0
        %268 = vmatpush1.msra.mxu0 0.0
        %269 = vmatprep.subr.mxu0 0.0
        %270 = vmatpush1.msra.mxu0 0.0
        %271 = vmatprep.subr.mxu0 0.0
        %272 = vmatpush1.msra.mxu0 0.0
        %273 = vmatprep.subr.mxu0 0.0
        %274 = vmatpush1.msra.mxu0 0.0
        %275 = vmatprep.subr.mxu0 0.0
        %276 = vmatpush1.msra.mxu0 0.0
        %277 = vmatprep.subr.mxu0 0.0
        %278 = vmatpush1.msra.mxu0 0.0
        %279 = vmatprep.subr.mxu0 0.0
        %280 = vmatpush1.msra.mxu0 0.0
        %281 = vmatprep.subr.mxu0 0.0
        %282 = vmatpush1.msra.mxu0 0.0
        %283 = vmatprep.subr.mxu0 0.0
        %284 = vmatpush1.msra.mxu0 0.0
        %285 = vmatprep.subr.mxu0 0.0
        %286 = vmatpush1.msra.mxu0 0.0
        %287 = vmatprep.subr.mxu0 0.0
        %288 = vmatpush1.msra.mxu0 0.0
        %289 = vmatprep.subr.mxu0 0.0
        %290 = vmatpush1.msra.mxu0 0.0
        %291 = vmatprep.subr.mxu0 0.0
        %292 = vmatpush1.msra.mxu0 0.0
        %293 = vmatprep.subr.mxu0 0.0
        %294 = vmatpush1.msra.mxu0 0.0
        %295 = vmatprep.subr.mxu0 0.0
        %296 = vmatpush1.msra.mxu0 0.0
        %297 = vmatprep.subr.mxu0 0.0
        %298 = vmatpush1.msra.mxu0 0.0
        %299 = vmatprep.subr.mxu0 0.0
        %300 = vmatpush1.msra.mxu0 0.0
        %301 = vmatprep.subr.mxu0 0.0
        %302 = vmatpush1.msra.mxu0 0.0
        %303 = vmatprep.subr.mxu0 0.0
        %304 = vmatpush1.msra.mxu0 0.0
        %305 = vmatprep.subr.mxu0 0.0
        %306 = vmatpush1.msra.mxu0 0.0
        %307 = vmatprep.subr.mxu0 0.0
        %308 = vmatpush1.msra.mxu0 0.0
        %309 = vmatprep.subr.mxu0 0.0
        %310 = vmatpush1.msra.mxu0 0.0
        %311 = vmatprep.subr.mxu0 0.0
        %312 = vmatpush1.msra.mxu0 0.0
        %313 = vmatprep.subr.mxu0 0.0
        %314 = vmatpush1.msra.mxu0 0.0
        %315 = vmatprep.subr.mxu0 0.0
        %316 = vmatpush1.msra.mxu0 0.0
        %317 = vmatprep.subr.mxu0 0.0
        %318 = vmatpush1.msra.mxu0 0.0
        %319 = vmatprep.subr.mxu0 0.0
        %320 = vmatpush1.msra.mxu0 0.0
        %321 = vmatprep.mubr.f32.mxu0 0.0
        %v322 = vand.u32 %v251, 4294901760
        %v323 = vsub.f32 %v251, %v322
        %v324 = vand.u32 %v323, 4294901760
        %v325 = vsub.f32 %v323, %v324
        %v326 = vand.u32 %v325, 4294901760
        %327 = vmatmul.mubr.f32.gmra.mrb[0].mxu0 %v326
        %v328 = vpop.f32.mrb[0].mxu0
        %v329 = vadd.f32 %v227, %v328
        %v330 = vpop.f32.mrb[0].mxu0
        %v331 = vadd.f32 %v231, %v330
        %332 = vdwg.mxu0
        %v333 = vand.u32 %v213, 4294901760
        %v334 = vsub.f32 %v213, %v333
        %v335 = vand.u32 %v334, 4294901760
        %v336 = vsub.f32 %v334, %v335
        %v337 = vand.u32 %v336, 4294901760
        %338 = vmatprep.subr.mxu0 %v337
        %v339 = vand.u32 %v212, 4294901760
        %v340 = vsub.f32 %v212, %v339
        %v341 = vand.u32 %v340, 4294901760
        %v342 = vsub.f32 %v340, %v341
        %v343 = vand.u32 %v342, 4294901760
        %344 = vmatpush1.msra.mxu0 %v343
        %v345 = vand.u32 %v218, 4294901760
        %v346 = vsub.f32 %v218, %v345
        %v347 = vand.u32 %v346, 4294901760
        %v348 = vsub.f32 %v346, %v347
        %v349 = vand.u32 %v348, 4294901760
        %350 = vmatprep.subr.mxu0 %v349
        %v351 = vand.u32 %v217, 4294901760
        %v352 = vsub.f32 %v217, %v351
        %v353 = vand.u32 %v352, 4294901760
        %v354 = vsub.f32 %v352, %v353
        %v355 = vand.u32 %v354, 4294901760
        %356 = vmatpush1.msra.mxu0 %v355
        %357 = vmatprep.subr.mxu0 0.0
        %358 = vmatpush1.msra.mxu0 0.0
        %359 = vmatprep.subr.mxu0 0.0
        %360 = vmatpush1.msra.mxu0 0.0
        %361 = vmatprep.subr.mxu0 0.0
        %362 = vmatpush1.msra.mxu0 0.0
        %363 = vmatprep.subr.mxu0 0.0
        %364 = vmatpush1.msra.mxu0 0.0
        %365 = vmatprep.subr.mxu0 0.0
        %366 = vmatpush1.msra.mxu0 0.0
        %367 = vmatprep.subr.mxu0 0.0
        %368 = vmatpush1.msra.mxu0 0.0
        %369 = vmatprep.subr.mxu0 0.0
        %370 = vmatpush1.msra.mxu0 0.0
        %371 = vmatprep.subr.mxu0 0.0
        %372 = vmatpush1.msra.mxu0 0.0
        %373 = vmatprep.subr.mxu0 0.0
        %374 = vmatpush1.msra.mxu0 0.0
        %375 = vmatprep.subr.mxu0 0.0
        %376 = vmatpush1.msra.mxu0 0.0
        %377 = vmatprep.subr.mxu0 0.0
        %378 = vmatpush1.msra.mxu0 0.0
        %379 = vmatprep.subr.mxu0 0.0
        %380 = vmatpush1.msra.mxu0 0.0
        %381 = vmatprep.subr.mxu0 0.0
        %382 = vmatpush1.msra.mxu0 0.0
        %383 = vmatprep.subr.mxu0 0.0
        %384 = vmatpush1.msra.mxu0 0.0
        %385 = vmatprep.subr.mxu0 0.0
        %386 = vmatpush1.msra.mxu0 0.0
        %387 = vmatprep.subr.mxu0 0.0
        %388 = vmatpush1.msra.mxu0 0.0
        %389 = vmatprep.subr.mxu0 0.0
        %390 = vmatpush1.msra.mxu0 0.0
        %391 = vmatprep.subr.mxu0 0.0
        %392 = vmatpush1.msra.mxu0 0.0
        %393 = vmatprep.subr.mxu0 0.0
        %394 = vmatpush1.msra.mxu0 0.0
        %395 = vmatprep.subr.mxu0 0.0
        %396 = vmatpush1.msra.mxu0 0.0
        %397 = vmatprep.subr.mxu0 0.0
        %398 = vmatpush1.msra.mxu0 0.0
        %399 = vmatprep.subr.mxu0 0.0
        %400 = vmatpush1.msra.mxu0 0.0
        %401 = vmatprep.subr.mxu0 0.0
        %402 = vmatpush1.msra.mxu0 0.0
        %403 = vmatprep.subr.mxu0 0.0
        %404 = vmatpush1.msra.mxu0 0.0
        %405 = vmatprep.subr.mxu0 0.0
        %406 = vmatpush1.msra.mxu0 0.0
        %407 = vmatprep.subr.mxu0 0.0
        %408 = vmatpush1.msra.mxu0 0.0
        %409 = vmatprep.subr.mxu0 0.0
        %410 = vmatpush1.msra.mxu0 0.0
        %411 = vmatprep.subr.mxu0 0.0
        %412 = vmatpush1.msra.mxu0 0.0
        %413 = vmatprep.subr.mxu0 0.0
        %414 = vmatpush1.msra.mxu0 0.0
        %415 = vmatprep.subr.mxu0 0.0
        %416 = vmatpush1.msra.mxu0 0.0
        %417 = vmatprep.mubr.f32.mxu0 0.0
        %v418 = vand.u32 %v251, 4294901760
        %419 = vmatmul.mubr.f32.gmra.mrb[0].mxu0 %v418
        %v420 = vpop.f32.mrb[0].mxu0
        %v421 = vadd.f32 %v329, %v420
        %v422 = vpop.f32.mrb[0].mxu0
        %v423 = vadd.f32 %v331, %v422
        %424 = vdwg.mxu0
        %v425 = vand.u32 %v213, 4294901760
        %v426 = vsub.f32 %v213, %v425
        %427 = vmatprep.subr.mxu0 %v426
        %v428 = vand.u32 %v212, 4294901760
        %v429 = vsub.f32 %v212, %v428
        %430 = vmatpush1.msra.mxu0 %v429
        %v431 = vand.u32 %v218, 4294901760
        %v432 = vsub.f32 %v218, %v431
        %433 = vmatprep.subr.mxu0 %v432
        %v434 = vand.u32 %v217, 4294901760
        %v435 = vsub.f32 %v217, %v434
        %436 = vmatpush1.msra.mxu0 %v435
        %437 = vmatprep.subr.mxu0 0.0
        %438 = vmatpush1.msra.mxu0 0.0
        %439 = vmatprep.subr.mxu0 0.0
        %440 = vmatpush1.msra.mxu0 0.0
        %441 = vmatprep.subr.mxu0 0.0
        %442 = vmatpush1.msra.mxu0 0.0
        %443 = vmatprep.subr.mxu0 0.0
        %444 = vmatpush1.msra.mxu0 0.0
        %445 = vmatprep.subr.mxu0 0.0
        %446 = vmatpush1.msra.mxu0 0.0
        %447 = vmatprep.subr.mxu0 0.0
        %448 = vmatpush1.msra.mxu0 0.0
        %449 = vmatprep.subr.mxu0 0.0
        %450 = vmatpush1.msra.mxu0 0.0
        %451 = vmatprep.subr.mxu0 0.0
        %452 = vmatpush1.msra.mxu0 0.0
        %453 = vmatprep.subr.mxu0 0.0
        %454 = vmatpush1.msra.mxu0 0.0
        %455 = vmatprep.subr.mxu0 0.0
        %456 = vmatpush1.msra.mxu0 0.0
        %457 = vmatprep.subr.mxu0 0.0
        %458 = vmatpush1.msra.mxu0 0.0
        %459 = vmatprep.subr.mxu0 0.0
        %460 = vmatpush1.msra.mxu0 0.0
        %461 = vmatprep.subr.mxu0 0.0
        %462 = vmatpush1.msra.mxu0 0.0
        %463 = vmatprep.subr.mxu0 0.0
        %464 = vmatpush1.msra.mxu0 0.0
        %465 = vmatprep.subr.mxu0 0.0
        %466 = vmatpush1.msra.mxu0 0.0
        %467 = vmatprep.subr.mxu0 0.0
        %468 = vmatpush1.msra.mxu0 0.0
        %469 = vmatprep.subr.mxu0 0.0
        %470 = vmatpush1.msra.mxu0 0.0
        %471 = vmatprep.subr.mxu0 0.0
        %472 = vmatpush1.msra.mxu0 0.0
        %473 = vmatprep.subr.mxu0 0.0
        %474 = vmatpush1.msra.mxu0 0.0
        %475 = vmatprep.subr.mxu0 0.0
        %476 = vmatpush1.msra.mxu0 0.0
        %477 = vmatprep.subr.mxu0 0.0
        %478 = vmatpush1.msra.mxu0 0.0
        %479 = vmatprep.subr.mxu0 0.0
        %480 = vmatpush1.msra.mxu0 0.0
        %481 = vmatprep.subr.mxu0 0.0
        %482 = vmatpush1.msra.mxu0 0.0
        %483 = vmatprep.subr.mxu0 0.0
        %484 = vmatpush1.msra.mxu0 0.0
        %485 = vmatprep.subr.mxu0 0.0
        %486 = vmatpush1.msra.mxu0 0.0
        %487 = vmatprep.subr.mxu0 0.0
        %488 = vmatpush1.msra.mxu0 0.0
        %489 = vmatprep.subr.mxu0 0.0
        %490 = vmatpush1.msra.mxu0 0.0
        %491 = vmatprep.subr.mxu0 0.0
        %492 = vmatpush1.msra.mxu0 0.0
        %493 = vmatprep.subr.mxu0 0.0
        %494 = vmatpush1.msra.mxu0 0.0
        %495 = vmatprep.subr.mxu0 0.0
        %496 = vmatpush1.msra.mxu0 0.0
        %497 = vmatprep.mubr.f32.mxu0 0.0
        %v498 = vand.u32 %v251, 4294901760
        %v499 = vsub.f32 %v251, %v498
        %500 = vmatmul.mubr.f32.gmra.mrb[0].mxu0 %v499
        %v501 = vpop.f32.mrb[0].mxu0
        %v502 = vadd.f32 %v421, %v501
        %v503 = vpop.f32.mrb[0].mxu0
        %v504 = vadd.f32 %v423, %v503
        %505 = vdwg.mxu0
        %v506 = vand.u32 %v213, 4294901760
        %507 = vmatprep.subr.mxu0 %v506
        %v508 = vand.u32 %v212, 4294901760
        %509 = vmatpush1.msra.mxu0 %v508
        %v510 = vand.u32 %v218, 4294901760
        %511 = vmatprep.subr.mxu0 %v510
        %v512 = vand.u32 %v217, 4294901760
        %513 = vmatpush1.msra.mxu0 %v512
        %514 = vmatprep.subr.mxu0 0.0
        %515 = vmatpush1.msra.mxu0 0.0
        %516 = vmatprep.subr.mxu0 0.0
        %517 = vmatpush1.msra.mxu0 0.0
        %518 = vmatprep.subr.mxu0 0.0
        %519 = vmatpush1.msra.mxu0 0.0
        %520 = vmatprep.subr.mxu0 0.0
        %521 = vmatpush1.msra.mxu0 0.0
        %522 = vmatprep.subr.mxu0 0.0
        %523 = vmatpush1.msra.mxu0 0.0
        %524 = vmatprep.subr.mxu0 0.0
        %525 = vmatpush1.msra.mxu0 0.0
        %526 = vmatprep.subr.mxu0 0.0
        %527 = vmatpush1.msra.mxu0 0.0
        %528 = vmatprep.subr.mxu0 0.0
        %529 = vmatpush1.msra.mxu0 0.0
        %530 = vmatprep.subr.mxu0 0.0
        %531 = vmatpush1.msra.mxu0 0.0
        %532 = vmatprep.subr.mxu0 0.0
        %533 = vmatpush1.msra.mxu0 0.0
        %534 = vmatprep.subr.mxu0 0.0
        %535 = vmatpush1.msra.mxu0 0.0
        %536 = vmatprep.subr.mxu0 0.0
        %537 = vmatpush1.msra.mxu0 0.0
        %538 = vmatprep.subr.mxu0 0.0
        %539 = vmatpush1.msra.mxu0 0.0
        %540 = vmatprep.subr.mxu0 0.0
        %541 = vmatpush1.msra.mxu0 0.0
        %542 = vmatprep.subr.mxu0 0.0
        %543 = vmatpush1.msra.mxu0 0.0
        %544 = vmatprep.subr.mxu0 0.0
        %545 = vmatpush1.msra.mxu0 0.0
        %546 = vmatprep.subr.mxu0 0.0
        %547 = vmatpush1.msra.mxu0 0.0
        %548 = vmatprep.subr.mxu0 0.0
        %549 = vmatpush1.msra.mxu0 0.0
        %550 = vmatprep.subr.mxu0 0.0
        %551 = vmatpush1.msra.mxu0 0.0
        %552 = vmatprep.subr.mxu0 0.0
        %553 = vmatpush1.msra.mxu0 0.0
        %554 = vmatprep.subr.mxu0 0.0
        %555 = vmatpush1.msra.mxu0 0.0
        %556 = vmatprep.subr.mxu0 0.0
        %557 = vmatpush1.msra.mxu0 0.0
        %558 = vmatprep.subr.mxu0 0.0
        %559 = vmatpush1.msra.mxu0 0.0
        %560 = vmatprep.subr.mxu0 0.0
        %561 = vmatpush1.msra.mxu0 0.0
        %562 = vmatprep.subr.mxu0 0.0
        %563 = vmatpush1.msra.mxu0 0.0
        %564 = vmatprep.subr.mxu0 0.0
        %565 = vmatpush1.msra.mxu0 0.0
        %566 = vmatprep.subr.mxu0 0.0
        %567 = vmatpush1.msra.mxu0 0.0
        %568 = vmatprep.subr.mxu0 0.0
        %569 = vmatpush1.msra.mxu0 0.0
        %570 = vmatprep.subr.mxu0 0.0
        %571 = vmatpush1.msra.mxu0 0.0
        %572 = vmatprep.subr.mxu0 0.0
        %573 = vmatpush1.msra.mxu0 0.0
        %574 = vmatprep.mubr.f32.mxu0 0.0
        %v575 = vand.u32 %v251, 4294901760
        %v576 = vsub.f32 %v251, %v575
        %v577 = vand.u32 %v576, 4294901760
        %578 = vmatmul.mubr.f32.gmra.mrb[0].mxu0 %v577
        %v579 = vpop.f32.mrb[0].mxu0
        %v580 = vadd.f32 %v502, %v579
        %v581 = vpop.f32.mrb[0].mxu0
        %v582 = vadd.f32 %v504, %v581
        %583 = vdwg.mxu0
        %v584 = vand.u32 %v213, 4294901760
        %v585 = vsub.f32 %v213, %v584
        %v586 = vand.u32 %v585, 4294901760
        %587 = vmatprep.subr.mxu0 %v586
        %v588 = vand.u32 %v212, 4294901760
        %v589 = vsub.f32 %v212, %v588
        %v590 = vand.u32 %v589, 4294901760
        %591 = vmatpush1.msra.mxu0 %v590
        %v592 = vand.u32 %v218, 4294901760
        %v593 = vsub.f32 %v218, %v592
        %v594 = vand.u32 %v593, 4294901760
        %595 = vmatprep.subr.mxu0 %v594
        %v596 = vand.u32 %v217, 4294901760
        %v597 = vsub.f32 %v217, %v596
        %v598 = vand.u32 %v597, 4294901760
        %599 = vmatpush1.msra.mxu0 %v598
        %600 = vmatprep.subr.mxu0 0.0
        %601 = vmatpush1.msra.mxu0 0.0
        %602 = vmatprep.subr.mxu0 0.0
        %603 = vmatpush1.msra.mxu0 0.0
        %604 = vmatprep.subr.mxu0 0.0
        %605 = vmatpush1.msra.mxu0 0.0
        %606 = vmatprep.subr.mxu0 0.0
        %607 = vmatpush1.msra.mxu0 0.0
        %608 = vmatprep.subr.mxu0 0.0
        %609 = vmatpush1.msra.mxu0 0.0
        %610 = vmatprep.subr.mxu0 0.0
        %611 = vmatpush1.msra.mxu0 0.0
        %612 = vmatprep.subr.mxu0 0.0
        %613 = vmatpush1.msra.mxu0 0.0
        %614 = vmatprep.subr.mxu0 0.0
        %615 = vmatpush1.msra.mxu0 0.0
        %616 = vmatprep.subr.mxu0 0.0
        %617 = vmatpush1.msra.mxu0 0.0
        %618 = vmatprep.subr.mxu0 0.0
        %619 = vmatpush1.msra.mxu0 0.0
        %620 = vmatprep.subr.mxu0 0.0
        %621 = vmatpush1.msra.mxu0 0.0
        %622 = vmatprep.subr.mxu0 0.0
        %623 = vmatpush1.msra.mxu0 0.0
        %624 = vmatprep.subr.mxu0 0.0
        %625 = vmatpush1.msra.mxu0 0.0
        %626 = vmatprep.subr.mxu0 0.0
        %627 = vmatpush1.msra.mxu0 0.0
        %628 = vmatprep.subr.mxu0 0.0
        %629 = vmatpush1.msra.mxu0 0.0
        %630 = vmatprep.subr.mxu0 0.0
        %631 = vmatpush1.msra.mxu0 0.0
        %632 = vmatprep.subr.mxu0 0.0
        %633 = vmatpush1.msra.mxu0 0.0
        %634 = vmatprep.subr.mxu0 0.0
        %635 = vmatpush1.msra.mxu0 0.0
        %636 = vmatprep.subr.mxu0 0.0
        %637 = vmatpush1.msra.mxu0 0.0
        %638 = vmatprep.subr.mxu0 0.0
        %639 = vmatpush1.msra.mxu0 0.0
        %640 = vmatprep.subr.mxu0 0.0
        %641 = vmatpush1.msra.mxu0 0.0
        %642 = vmatprep.subr.mxu0 0.0
        %643 = vmatpush1.msra.mxu0 0.0
        %644 = vmatprep.subr.mxu0 0.0
        %645 = vmatpush1.msra.mxu0 0.0
        %646 = vmatprep.subr.mxu0 0.0
        %647 = vmatpush1.msra.mxu0 0.0
        %648 = vmatprep.subr.mxu0 0.0
        %649 = vmatpush1.msra.mxu0 0.0
        %650 = vmatprep.subr.mxu0 0.0
        %651 = vmatpush1.msra.mxu0 0.0
        %652 = vmatprep.subr.mxu0 0.0
        %653 = vmatpush1.msra.mxu0 0.0
        %654 = vmatprep.subr.mxu0 0.0
        %655 = vmatpush1.msra.mxu0 0.0
        %656 = vmatprep.subr.mxu0 0.0
        %657 = vmatpush1.msra.mxu0 0.0
        %658 = vmatprep.subr.mxu0 0.0
        %659 = vmatpush1.msra.mxu0 0.0
        %660 = vmatprep.mubr.f32.mxu0 0.0
        %v661 = vand.u32 %v251, 4294901760
        %662 = vmatmul.mubr.f32.gmra.mrb[0].mxu0 %v661
        %v663 = vpop.f32.mrb[0].mxu0
        %v664 = vadd.f32 %v580, %v663
        %v665 = vpop.f32.mrb[0].mxu0
        %v666 = vadd.f32 %v582, %v665
        %667 = vdwg.mxu0
        %v668 = vand.u32 %v213, 4294901760
        %669 = vmatprep.subr.mxu0 %v668
        %v670 = vand.u32 %v212, 4294901760
        %671 = vmatpush1.msra.mxu0 %v670
        %v672 = vand.u32 %v218, 4294901760
        %673 = vmatprep.subr.mxu0 %v672
        %v674 = vand.u32 %v217, 4294901760
        %675 = vmatpush1.msra.mxu0 %v674
        %676 = vmatprep.subr.mxu0 0.0
        %677 = vmatpush1.msra.mxu0 0.0
        %678 = vmatprep.subr.mxu0 0.0
        %679 = vmatpush1.msra.mxu0 0.0
        %680 = vmatprep.subr.mxu0 0.0
        %681 = vmatpush1.msra.mxu0 0.0
        %682 = vmatprep.subr.mxu0 0.0
        %683 = vmatpush1.msra.mxu0 0.0
        %684 = vmatprep.subr.mxu0 0.0
        %685 = vmatpush1.msra.mxu0 0.0
        %686 = vmatprep.subr.mxu0 0.0
        %687 = vmatpush1.msra.mxu0 0.0
        %688 = vmatprep.subr.mxu0 0.0
        %689 = vmatpush1.msra.mxu0 0.0
        %690 = vmatprep.subr.mxu0 0.0
        %691 = vmatpush1.msra.mxu0 0.0
        %692 = vmatprep.subr.mxu0 0.0
        %693 = vmatpush1.msra.mxu0 0.0
        %694 = vmatprep.subr.mxu0 0.0
        %695 = vmatpush1.msra.mxu0 0.0
        %696 = vmatprep.subr.mxu0 0.0
        %697 = vmatpush1.msra.mxu0 0.0
        %698 = vmatprep.subr.mxu0 0.0
        %699 = vmatpush1.msra.mxu0 0.0
        %700 = vmatprep.subr.mxu0 0.0
        %701 = vmatpush1.msra.mxu0 0.0
        %702 = vmatprep.subr.mxu0 0.0
        %703 = vmatpush1.msra.mxu0 0.0
        %704 = vmatprep.subr.mxu0 0.0
        %705 = vmatpush1.msra.mxu0 0.0
        %706 = vmatprep.subr.mxu0 0.0
        %707 = vmatpush1.msra.mxu0 0.0
        %708 = vmatprep.subr.mxu0 0.0
        %709 = vmatpush1.msra.mxu0 0.0
        %710 = vmatprep.subr.mxu0 0.0
        %711 = vmatpush1.msra.mxu0 0.0
        %712 = vmatprep.subr.mxu0 0.0
        %713 = vmatpush1.msra.mxu0 0.0
        %714 = vmatprep.subr.mxu0 0.0
        %715 = vmatpush1.msra.mxu0 0.0
        %716 = vmatprep.subr.mxu0 0.0
        %717 = vmatpush1.msra.mxu0 0.0
        %718 = vmatprep.subr.mxu0 0.0
        %719 = vmatpush1.msra.mxu0 0.0
        %720 = vmatprep.subr.mxu0 0.0
        %721 = vmatpush1.msra.mxu0 0.0
        %722 = vmatprep.subr.mxu0 0.0
        %723 = vmatpush1.msra.mxu0 0.0
        %724 = vmatprep.subr.mxu0 0.0
        %725 = vmatpush1.msra.mxu0 0.0
        %726 = vmatprep.subr.mxu0 0.0
        %727 = vmatpush1.msra.mxu0 0.0
        %728 = vmatprep.subr.mxu0 0.0
        %729 = vmatpush1.msra.mxu0 0.0
        %730 = vmatprep.subr.mxu0 0.0
        %731 = vmatpush1.msra.mxu0 0.0
        %732 = vmatprep.subr.mxu0 0.0
        %733 = vmatpush1.msra.mxu0 0.0
        %734 = vmatprep.subr.mxu0 0.0
        %735 = vmatpush1.msra.mxu0 0.0
        %736 = vmatprep.mubr.f32.mxu0 0.0
        %v737 = vand.u32 %v251, 4294901760
        %738 = vmatmul.mubr.f32.gmra.mrb[0].mxu0 %v737
        %v739 = vpop.f32.mrb[0].mxu0
        %v740 = vadd.f32 %v664, %v739
        %v741 = vpop.f32.mrb[0].mxu0
        %v742 = vadd.f32 %v666, %v741
        %743 = vdwg.mxu0
        %v744 = vand.u32 %v215, 4294901760
        %745 = vmatprep.subr.mxu0 %v744
        %v746 = vand.u32 %v214, 4294901760
        %747 = vmatpush1.msra.mxu0 %v746
        %v748 = vand.u32 %v220, 4294901760
        %749 = vmatprep.subr.mxu0 %v748
        %v750 = vand.u32 %v219, 4294901760
        %751 = vmatpush1.msra.mxu0 %v750
        %752 = vmatprep.subr.mxu0 0.0
        %753 = vmatpush1.msra.mxu0 0.0
        %754 = vmatprep.subr.mxu0 0.0
        %755 = vmatpush1.msra.mxu0 0.0
        %756 = vmatprep.subr.mxu0 0.0
        %757 = vmatpush1.msra.mxu0 0.0
        %758 = vmatprep.subr.mxu0 0.0
        %759 = vmatpush1.msra.mxu0 0.0
        %760 = vmatprep.subr.mxu0 0.0
        %761 = vmatpush1.msra.mxu0 0.0
        %762 = vmatprep.subr.mxu0 0.0
        %763 = vmatpush1.msra.mxu0 0.0
        %764 = vmatprep.subr.mxu0 0.0
        %765 = vmatpush1.msra.mxu0 0.0
        %766 = vmatprep.subr.mxu0 0.0
        %767 = vmatpush1.msra.mxu0 0.0
        %768 = vmatprep.subr.mxu0 0.0
        %769 = vmatpush1.msra.mxu0 0.0
        %770 = vmatprep.subr.mxu0 0.0
        %771 = vmatpush1.msra.mxu0 0.0
        %772 = vmatprep.subr.mxu0 0.0
        %773 = vmatpush1.msra.mxu0 0.0
        %774 = vmatprep.subr.mxu0 0.0
        %775 = vmatpush1.msra.mxu0 0.0
        %776 = vmatprep.subr.mxu0 0.0
        %777 = vmatpush1.msra.mxu0 0.0
        %778 = vmatprep.subr.mxu0 0.0
        %779 = vmatpush1.msra.mxu0 0.0
        %780 = vmatprep.subr.mxu0 0.0
        %781 = vmatpush1.msra.mxu0 0.0
        %782 = vmatprep.subr.mxu0 0.0
        %783 = vmatpush1.msra.mxu0 0.0
        %784 = vmatprep.subr.mxu0 0.0
        %785 = vmatpush1.msra.mxu0 0.0
        %786 = vmatprep.subr.mxu0 0.0
        %787 = vmatpush1.msra.mxu0 0.0
        %788 = vmatprep.subr.mxu0 0.0
        %789 = vmatpush1.msra.mxu0 0.0
        %790 = vmatprep.subr.mxu0 0.0
        %791 = vmatpush1.msra.mxu0 0.0
        %792 = vmatprep.subr.mxu0 0.0
        %793 = vmatpush1.msra.mxu0 0.0
        %794 = vmatprep.subr.mxu0 0.0
        %795 = vmatpush1.msra.mxu0 0.0
        %796 = vmatprep.subr.mxu0 0.0
        %797 = vmatpush1.msra.mxu0 0.0
        %798 = vmatprep.subr.mxu0 0.0
        %799 = vmatpush1.msra.mxu0 0.0
        %800 = vmatprep.subr.mxu0 0.0
        %801 = vmatpush1.msra.mxu0 0.0
        %802 = vmatprep.subr.mxu0 0.0
        %803 = vmatpush1.msra.mxu0 0.0
        %804 = vmatprep.subr.mxu0 0.0
        %805 = vmatpush1.msra.mxu0 0.0
        %806 = vmatprep.subr.mxu0 0.0
        %807 = vmatpush1.msra.mxu0 0.0
        %808 = vmatprep.subr.mxu0 0.0
        %809 = vmatpush1.msra.mxu0 0.0
        %810 = vmatprep.subr.mxu0 0.0
        %811 = vmatpush1.msra.mxu0 0.0
        %812 = vmatprep.mubr.f32.mxu0 0.0
        %v813 = vand.u32 %v251, 4294901760
        %v814 = vsub.f32 %v251, %v813
        %v815 = vand.u32 %v814, 4294901760
        %v816 = vsub.f32 %v814, %v815
        %v817 = vand.u32 %v816, 4294901760
        %818 = vmatmul.mubr.f32.gmra.mrb[0].mxu0 %v817
        %v819 = vpop.f32.mrb[0].mxu0
        %v820 = vadd.f32 %v235, %v819
        %v821 = vpop.f32.mrb[0].mxu0
        %v822 = vadd.f32 %v239, %v821
        %823 = vdwg.mxu0
        %v824 = vand.u32 %v215, 4294901760
        %v825 = vsub.f32 %v215, %v824
        %v826 = vand.u32 %v825, 4294901760
        %v827 = vsub.f32 %v825, %v826
        %v828 = vand.u32 %v827, 4294901760
        %829 = vmatprep.subr.mxu0 %v828
        %v830 = vand.u32 %v214, 4294901760
        %v831 = vsub.f32 %v214, %v830
        %v832 = vand.u32 %v831, 4294901760
        %v833 = vsub.f32 %v831, %v832
        %v834 = vand.u32 %v833, 4294901760
        %835 = vmatpush1.msra.mxu0 %v834
        %v836 = vand.u32 %v220, 4294901760
        %v837 = vsub.f32 %v220, %v836
        %v838 = vand.u32 %v837, 4294901760
        %v839 = vsub.f32 %v837, %v838
        %v840 = vand.u32 %v839, 4294901760
        %841 = vmatprep.subr.mxu0 %v840
        %v842 = vand.u32 %v219, 4294901760
        %v843 = vsub.f32 %v219, %v842
        %v844 = vand.u32 %v843, 4294901760
        %v845 = vsub.f32 %v843, %v844
        %v846 = vand.u32 %v845, 4294901760
        %847 = vmatpush1.msra.mxu0 %v846
        %848 = vmatprep.subr.mxu0 0.0
        %849 = vmatpush1.msra.mxu0 0.0
        %850 = vmatprep.subr.mxu0 0.0
        %851 = vmatpush1.msra.mxu0 0.0
        %852 = vmatprep.subr.mxu0 0.0
        %853 = vmatpush1.msra.mxu0 0.0
        %854 = vmatprep.subr.mxu0 0.0
        %855 = vmatpush1.msra.mxu0 0.0
        %856 = vmatprep.subr.mxu0 0.0
        %857 = vmatpush1.msra.mxu0 0.0
        %858 = vmatprep.subr.mxu0 0.0
        %859 = vmatpush1.msra.mxu0 0.0
        %860 = vmatprep.subr.mxu0 0.0
        %861 = vmatpush1.msra.mxu0 0.0
        %862 = vmatprep.subr.mxu0 0.0
        %863 = vmatpush1.msra.mxu0 0.0
        %864 = vmatprep.subr.mxu0 0.0
        %865 = vmatpush1.msra.mxu0 0.0
        %866 = vmatprep.subr.mxu0 0.0
        %867 = vmatpush1.msra.mxu0 0.0
        %868 = vmatprep.subr.mxu0 0.0
        %869 = vmatpush1.msra.mxu0 0.0
        %870 = vmatprep.subr.mxu0 0.0
        %871 = vmatpush1.msra.mxu0 0.0
        %872 = vmatprep.subr.mxu0 0.0
        %873 = vmatpush1.msra.mxu0 0.0
        %874 = vmatprep.subr.mxu0 0.0
        %875 = vmatpush1.msra.mxu0 0.0
        %876 = vmatprep.subr.mxu0 0.0
        %877 = vmatpush1.msra.mxu0 0.0
        %878 = vmatprep.subr.mxu0 0.0
        %879 = vmatpush1.msra.mxu0 0.0
        %880 = vmatprep.subr.mxu0 0.0
        %881 = vmatpush1.msra.mxu0 0.0
        %882 = vmatprep.subr.mxu0 0.0
        %883 = vmatpush1.msra.mxu0 0.0
        %884 = vmatprep.subr.mxu0 0.0
        %885 = vmatpush1.msra.mxu0 0.0
        %886 = vmatprep.subr.mxu0 0.0
        %887 = vmatpush1.msra.mxu0 0.0
        %888 = vmatprep.subr.mxu0 0.0
        %889 = vmatpush1.msra.mxu0 0.0
        %890 = vmatprep.subr.mxu0 0.0
        %891 = vmatpush1.msra.mxu0 0.0
        %892 = vmatprep.subr.mxu0 0.0
        %893 = vmatpush1.msra.mxu0 0.0
        %894 = vmatprep.subr.mxu0 0.0
        %895 = vmatpush1.msra.mxu0 0.0
        %896 = vmatprep.subr.mxu0 0.0
        %897 = vmatpush1.msra.mxu0 0.0
        %898 = vmatprep.subr.mxu0 0.0
        %899 = vmatpush1.msra.mxu0 0.0
        %900 = vmatprep.subr.mxu0 0.0
        %901 = vmatpush1.msra.mxu0 0.0
        %902 = vmatprep.subr.mxu0 0.0
        %903 = vmatpush1.msra.mxu0 0.0
        %904 = vmatprep.subr.mxu0 0.0
        %905 = vmatpush1.msra.mxu0 0.0
        %906 = vmatprep.subr.mxu0 0.0
        %907 = vmatpush1.msra.mxu0 0.0
        %908 = vmatprep.mubr.f32.mxu0 0.0
        %v909 = vand.u32 %v251, 4294901760
        %910 = vmatmul.mubr.f32.gmra.mrb[0].mxu0 %v909
        %v911 = vpop.f32.mrb[0].mxu0
        %v912 = vadd.f32 %v820, %v911
        %v913 = vpop.f32.mrb[0].mxu0
        %v914 = vadd.f32 %v822, %v913
        %915 = vdwg.mxu0
        %v916 = vand.u32 %v215, 4294901760
        %v917 = vsub.f32 %v215, %v916
        %918 = vmatprep.subr.mxu0 %v917
        %v919 = vand.u32 %v214, 4294901760
        %v920 = vsub.f32 %v214, %v919
        %921 = vmatpush1.msra.mxu0 %v920
        %v922 = vand.u32 %v220, 4294901760
        %v923 = vsub.f32 %v220, %v922
        %924 = vmatprep.subr.mxu0 %v923
        %v925 = vand.u32 %v219, 4294901760
        %v926 = vsub.f32 %v219, %v925
        %927 = vmatpush1.msra.mxu0 %v926
        %928 = vmatprep.subr.mxu0 0.0
        %929 = vmatpush1.msra.mxu0 0.0
        %930 = vmatprep.subr.mxu0 0.0
        %931 = vmatpush1.msra.mxu0 0.0
        %932 = vmatprep.subr.mxu0 0.0
        %933 = vmatpush1.msra.mxu0 0.0
        %934 = vmatprep.subr.mxu0 0.0
        %935 = vmatpush1.msra.mxu0 0.0
        %936 = vmatprep.subr.mxu0 0.0
        %937 = vmatpush1.msra.mxu0 0.0
        %938 = vmatprep.subr.mxu0 0.0
        %939 = vmatpush1.msra.mxu0 0.0
        %940 = vmatprep.subr.mxu0 0.0
        %941 = vmatpush1.msra.mxu0 0.0
        %942 = vmatprep.subr.mxu0 0.0
        %943 = vmatpush1.msra.mxu0 0.0
        %944 = vmatprep.subr.mxu0 0.0
        %945 = vmatpush1.msra.mxu0 0.0
        %946 = vmatprep.subr.mxu0 0.0
        %947 = vmatpush1.msra.mxu0 0.0
        %948 = vmatprep.subr.mxu0 0.0
        %949 = vmatpush1.msra.mxu0 0.0
        %950 = vmatprep.subr.mxu0 0.0
        %951 = vmatpush1.msra.mxu0 0.0
        %952 = vmatprep.subr.mxu0 0.0
        %953 = vmatpush1.msra.mxu0 0.0
        %954 = vmatprep.subr.mxu0 0.0
        %955 = vmatpush1.msra.mxu0 0.0
        %956 = vmatprep.subr.mxu0 0.0
        %957 = vmatpush1.msra.mxu0 0.0
        %958 = vmatprep.subr.mxu0 0.0
        %959 = vmatpush1.msra.mxu0 0.0
        %960 = vmatprep.subr.mxu0 0.0
        %961 = vmatpush1.msra.mxu0 0.0
        %962 = vmatprep.subr.mxu0 0.0
        %963 = vmatpush1.msra.mxu0 0.0
        %964 = vmatprep.subr.mxu0 0.0
        %965 = vmatpush1.msra.mxu0 0.0
        %966 = vmatprep.subr.mxu0 0.0
        %967 = vmatpush1.msra.mxu0 0.0
        %968 = vmatprep.subr.mxu0 0.0
        %969 = vmatpush1.msra.mxu0 0.0
        %970 = vmatprep.subr.mxu0 0.0
        %971 = vmatpush1.msra.mxu0 0.0
        %972 = vmatprep.subr.mxu0 0.0
        %973 = vmatpush1.msra.mxu0 0.0
        %974 = vmatprep.subr.mxu0 0.0
        %975 = vmatpush1.msra.mxu0 0.0
        %976 = vmatprep.subr.mxu0 0.0
        %977 = vmatpush1.msra.mxu0 0.0
        %978 = vmatprep.subr.mxu0 0.0
        %979 = vmatpush1.msra.mxu0 0.0
        %980 = vmatprep.subr.mxu0 0.0
        %981 = vmatpush1.msra.mxu0 0.0
        %982 = vmatprep.subr.mxu0 0.0
        %983 = vmatpush1.msra.mxu0 0.0
        %984 = vmatprep.subr.mxu0 0.0
        %985 = vmatpush1.msra.mxu0 0.0
        %986 = vmatprep.subr.mxu0 0.0
        %987 = vmatpush1.msra.mxu0 0.0
        %988 = vmatprep.mubr.f32.mxu0 0.0
        %v989 = vand.u32 %v251, 4294901760
        %v990 = vsub.f32 %v251, %v989
        %991 = vmatmul.mubr.f32.gmra.mrb[0].mxu0 %v990
        %v992 = vpop.f32.mrb[0].mxu0
        %v993 = vadd.f32 %v912, %v992
        %v994 = vpop.f32.mrb[0].mxu0
        %v995 = vadd.f32 %v914, %v994
        %996 = vdwg.mxu0
        %v997 = vand.u32 %v215, 4294901760
        %998 = vmatprep.subr.mxu0 %v997
        %v999 = vand.u32 %v214, 4294901760
        %1000 = vmatpush1.msra.mxu0 %v999
        %v1001 = vand.u32 %v220, 4294901760
        %1002 = vmatprep.subr.mxu0 %v1001
        %v1003 = vand.u32 %v219, 4294901760
        %1004 = vmatpush1.msra.mxu0 %v1003
        %1005 = vmatprep.subr.mxu0 0.0
        %1006 = vmatpush1.msra.mxu0 0.0
        %1007 = vmatprep.subr.mxu0 0.0
        %1008 = vmatpush1.msra.mxu0 0.0
        %1009 = vmatprep.subr.mxu0 0.0
        %1010 = vmatpush1.msra.mxu0 0.0
        %1011 = vmatprep.subr.mxu0 0.0
        %1012 = vmatpush1.msra.mxu0 0.0
        %1013 = vmatprep.subr.mxu0 0.0
        %1014 = vmatpush1.msra.mxu0 0.0
        %1015 = vmatprep.subr.mxu0 0.0
        %1016 = vmatpush1.msra.mxu0 0.0
        %1017 = vmatprep.subr.mxu0 0.0
        %1018 = vmatpush1.msra.mxu0 0.0
        %1019 = vmatprep.subr.mxu0 0.0
        %1020 = vmatpush1.msra.mxu0 0.0
        %1021 = vmatprep.subr.mxu0 0.0
        %1022 = vmatpush1.msra.mxu0 0.0
        %1023 = vmatprep.subr.mxu0 0.0
        %1024 = vmatpush1.msra.mxu0 0.0
        %1025 = vmatprep.subr.mxu0 0.0
        %1026 = vmatpush1.msra.mxu0 0.0
        %1027 = vmatprep.subr.mxu0 0.0
        %1028 = vmatpush1.msra.mxu0 0.0
        %1029 = vmatprep.subr.mxu0 0.0
        %1030 = vmatpush1.msra.mxu0 0.0
        %1031 = vmatprep.subr.mxu0 0.0
        %1032 = vmatpush1.msra.mxu0 0.0
        %1033 = vmatprep.subr.mxu0 0.0
        %1034 = vmatpush1.msra.mxu0 0.0
        %1035 = vmatprep.subr.mxu0 0.0
        %1036 = vmatpush1.msra.mxu0 0.0
        %1037 = vmatprep.subr.mxu0 0.0
        %1038 = vmatpush1.msra.mxu0 0.0
        %1039 = vmatprep.subr.mxu0 0.0
        %1040 = vmatpush1.msra.mxu0 0.0
        %1041 = vmatprep.subr.mxu0 0.0
        %1042 = vmatpush1.msra.mxu0 0.0
        %1043 = vmatprep.subr.mxu0 0.0
        %1044 = vmatpush1.msra.mxu0 0.0
        %1045 = vmatprep.subr.mxu0 0.0
        %1046 = vmatpush1.msra.mxu0 0.0
        %1047 = vmatprep.subr.mxu0 0.0
        %1048 = vmatpush1.msra.mxu0 0.0
        %1049 = vmatprep.subr.mxu0 0.0
        %1050 = vmatpush1.msra.mxu0 0.0
        %1051 = vmatprep.subr.mxu0 0.0
        %1052 = vmatpush1.msra.mxu0 0.0
        %1053 = vmatprep.subr.mxu0 0.0
        %1054 = vmatpush1.msra.mxu0 0.0
        %1055 = vmatprep.subr.mxu0 0.0
        %1056 = vmatpush1.msra.mxu0 0.0
        %1057 = vmatprep.subr.mxu0 0.0
        %1058 = vmatpush1.msra.mxu0 0.0
        %1059 = vmatprep.subr.mxu0 0.0
        %1060 = vmatpush1.msra.mxu0 0.0
        %1061 = vmatprep.subr.mxu0 0.0
        %1062 = vmatpush1.msra.mxu0 0.0
        %1063 = vmatprep.subr.mxu0 0.0
        %1064 = vmatpush1.msra.mxu0 0.0
        %1065 = vmatprep.mubr.f32.mxu0 0.0
        %v1066 = vand.u32 %v251, 4294901760
        %v1067 = vsub.f32 %v251, %v1066
        %v1068 = vand.u32 %v1067, 4294901760
        %1069 = vmatmul.mubr.f32.gmra.mrb[0].mxu0 %v1068
        %v1070 = vpop.f32.mrb[0].mxu0
        %v1071 = vadd.f32 %v993, %v1070
        %v1072 = vpop.f32.mrb[0].mxu0
        %v1073 = vadd.f32 %v995, %v1072
        %1074 = vdwg.mxu0
        %v1075 = vand.u32 %v215, 4294901760
        %v1076 = vsub.f32 %v215, %v1075
        %v1077 = vand.u32 %v1076, 4294901760
        %1078 = vmatprep.subr.mxu0 %v1077
        %v1079 = vand.u32 %v214, 4294901760
        %v1080 = vsub.f32 %v214, %v1079
        %v1081 = vand.u32 %v1080, 4294901760
        %1082 = vmatpush1.msra.mxu0 %v1081
        %v1083 = vand.u32 %v220, 4294901760
        %v1084 = vsub.f32 %v220, %v1083
        %v1085 = vand.u32 %v1084, 4294901760
        %1086 = vmatprep.subr.mxu0 %v1085
        %v1087 = vand.u32 %v219, 4294901760
        %v1088 = vsub.f32 %v219, %v1087
        %v1089 = vand.u32 %v1088, 4294901760
        %1090 = vmatpush1.msra.mxu0 %v1089
        %1091 = vmatprep.subr.mxu0 0.0
        %1092 = vmatpush1.msra.mxu0 0.0
        %1093 = vmatprep.subr.mxu0 0.0
        %1094 = vmatpush1.msra.mxu0 0.0
        %1095 = vmatprep.subr.mxu0 0.0
        %1096 = vmatpush1.msra.mxu0 0.0
        %1097 = vmatprep.subr.mxu0 0.0
        %1098 = vmatpush1.msra.mxu0 0.0
        %1099 = vmatprep.subr.mxu0 0.0
        %1100 = vmatpush1.msra.mxu0 0.0
        %1101 = vmatprep.subr.mxu0 0.0
        %1102 = vmatpush1.msra.mxu0 0.0
        %1103 = vmatprep.subr.mxu0 0.0
        %1104 = vmatpush1.msra.mxu0 0.0
        %1105 = vmatprep.subr.mxu0 0.0
        %1106 = vmatpush1.msra.mxu0 0.0
        %1107 = vmatprep.subr.mxu0 0.0
        %1108 = vmatpush1.msra.mxu0 0.0
        %1109 = vmatprep.subr.mxu0 0.0
        %1110 = vmatpush1.msra.mxu0 0.0
        %1111 = vmatprep.subr.mxu0 0.0
        %1112 = vmatpush1.msra.mxu0 0.0
        %1113 = vmatprep.subr.mxu0 0.0
        %1114 = vmatpush1.msra.mxu0 0.0
        %1115 = vmatprep.subr.mxu0 0.0
        %1116 = vmatpush1.msra.mxu0 0.0
        %1117 = vmatprep.subr.mxu0 0.0
        %1118 = vmatpush1.msra.mxu0 0.0
        %1119 = vmatprep.subr.mxu0 0.0
        %1120 = vmatpush1.msra.mxu0 0.0
        %1121 = vmatprep.subr.mxu0 0.0
        %1122 = vmatpush1.msra.mxu0 0.0
        %1123 = vmatprep.subr.mxu0 0.0
        %1124 = vmatpush1.msra.mxu0 0.0
        %1125 = vmatprep.subr.mxu0 0.0
        %1126 = vmatpush1.msra.mxu0 0.0
        %1127 = vmatprep.subr.mxu0 0.0
        %1128 = vmatpush1.msra.mxu0 0.0
        %1129 = vmatprep.subr.mxu0 0.0
        %1130 = vmatpush1.msra.mxu0 0.0
        %1131 = vmatprep.subr.mxu0 0.0
        %1132 = vmatpush1.msra.mxu0 0.0
        %1133 = vmatprep.subr.mxu0 0.0
        %1134 = vmatpush1.msra.mxu0 0.0
        %1135 = vmatprep.subr.mxu0 0.0
        %1136 = vmatpush1.msra.mxu0 0.0
        %1137 = vmatprep.subr.mxu0 0.0
        %1138 = vmatpush1.msra.mxu0 0.0
        %1139 = vmatprep.subr.mxu0 0.0
        %1140 = vmatpush1.msra.mxu0 0.0
        %1141 = vmatprep.subr.mxu0 0.0
        %1142 = vmatpush1.msra.mxu0 0.0
        %1143 = vmatprep.subr.mxu0 0.0
        %1144 = vmatpush1.msra.mxu0 0.0
        %1145 = vmatprep.subr.mxu0 0.0
        %1146 = vmatpush1.msra.mxu0 0.0
        %1147 = vmatprep.subr.mxu0 0.0
        %1148 = vmatpush1.msra.mxu0 0.0
        %1149 = vmatprep.subr.mxu0 0.0
        %1150 = vmatpush1.msra.mxu0 0.0
        %1151 = vmatprep.mubr.f32.mxu0 0.0
        %v1152 = vand.u32 %v251, 4294901760
        %1153 = vmatmul.mubr.f32.gmra.mrb[0].mxu0 %v1152
        %v1154 = vpop.f32.mrb[0].mxu0
        %v1155 = vadd.f32 %v1071, %v1154
        %v1156 = vpop.f32.mrb[0].mxu0
        %v1157 = vadd.f32 %v1073, %v1156
        %1158 = vdwg.mxu0
        %v1159 = vand.u32 %v215, 4294901760
        %1160 = vmatprep.subr.mxu0 %v1159
        %v1161 = vand.u32 %v214, 4294901760
        %1162 = vmatpush1.msra.mxu0 %v1161
        %v1163 = vand.u32 %v220, 4294901760
        %1164 = vmatprep.subr.mxu0 %v1163
        %v1165 = vand.u32 %v219, 4294901760
        %1166 = vmatpush1.msra.mxu0 %v1165
        %1167 = vmatprep.subr.mxu0 0.0
        %1168 = vmatpush1.msra.mxu0 0.0
        %1169 = vmatprep.subr.mxu0 0.0
        %1170 = vmatpush1.msra.mxu0 0.0
        %1171 = vmatprep.subr.mxu0 0.0
        %1172 = vmatpush1.msra.mxu0 0.0
        %1173 = vmatprep.subr.mxu0 0.0
        %1174 = vmatpush1.msra.mxu0 0.0
        %1175 = vmatprep.subr.mxu0 0.0
        %1176 = vmatpush1.msra.mxu0 0.0
        %1177 = vmatprep.subr.mxu0 0.0
        %1178 = vmatpush1.msra.mxu0 0.0
        %1179 = vmatprep.subr.mxu0 0.0
        %1180 = vmatpush1.msra.mxu0 0.0
        %1181 = vmatprep.subr.mxu0 0.0
        %1182 = vmatpush1.msra.mxu0 0.0
        %1183 = vmatprep.subr.mxu0 0.0
        %1184 = vmatpush1.msra.mxu0 0.0
        %1185 = vmatprep.subr.mxu0 0.0
        %1186 = vmatpush1.msra.mxu0 0.0
        %1187 = vmatprep.subr.mxu0 0.0
        %1188 = vmatpush1.msra.mxu0 0.0
        %1189 = vmatprep.subr.mxu0 0.0
        %1190 = vmatpush1.msra.mxu0 0.0
        %1191 = vmatprep.subr.mxu0 0.0
        %1192 = vmatpush1.msra.mxu0 0.0
        %1193 = vmatprep.subr.mxu0 0.0
        %1194 = vmatpush1.msra.mxu0 0.0
        %1195 = vmatprep.subr.mxu0 0.0
        %1196 = vmatpush1.msra.mxu0 0.0
        %1197 = vmatprep.subr.mxu0 0.0
        %1198 = vmatpush1.msra.mxu0 0.0
        %1199 = vmatprep.subr.mxu0 0.0
        %1200 = vmatpush1.msra.mxu0 0.0
        %1201 = vmatprep.subr.mxu0 0.0
        %1202 = vmatpush1.msra.mxu0 0.0
        %1203 = vmatprep.subr.mxu0 0.0
        %1204 = vmatpush1.msra.mxu0 0.0
        %1205 = vmatprep.subr.mxu0 0.0
        %1206 = vmatpush1.msra.mxu0 0.0
        %1207 = vmatprep.subr.mxu0 0.0
        %1208 = vmatpush1.msra.mxu0 0.0
        %1209 = vmatprep.subr.mxu0 0.0
        %1210 = vmatpush1.msra.mxu0 0.0
        %1211 = vmatprep.subr.mxu0 0.0
        %1212 = vmatpush1.msra.mxu0 0.0
        %1213 = vmatprep.subr.mxu0 0.0
        %1214 = vmatpush1.msra.mxu0 0.0
        %1215 = vmatprep.subr.mxu0 0.0
        %1216 = vmatpush1.msra.mxu0 0.0
        %1217 = vmatprep.subr.mxu0 0.0
        %1218 = vmatpush1.msra.mxu0 0.0
        %1219 = vmatprep.subr.mxu0 0.0
        %1220 = vmatpush1.msra.mxu0 0.0
        %1221 = vmatprep.subr.mxu0 0.0
        %1222 = vmatpush1.msra.mxu0 0.0
        %1223 = vmatprep.subr.mxu0 0.0
        %1224 = vmatpush1.msra.mxu0 0.0
        %1225 = vmatprep.subr.mxu0 0.0
        %1226 = vmatpush1.msra.mxu0 0.0
        %1227 = vmatprep.mubr.f32.mxu0 0.0
        %v1228 = vand.u32 %v251, 4294901760
        %1229 = vmatmul.mubr.f32.gmra.mrb[0].mxu0 %v1228
        %v1230 = vpop.f32.mrb[0].mxu0
        %v1231 = vadd.f32 %v1155, %v1230
        %v1232 = vpop.f32.mrb[0].mxu0
        %v1233 = vadd.f32 %v1157, %v1232
        %1234 = vdwg.mxu0
        %1235 = vmatprep.subr.mxu0 0.0
        %v1236 = vand.u32 %v216, 4294901760
        %1237 = vmatpush1.msra.mxu0 %v1236
        %1238 = vmatprep.subr.mxu0 0.0
        %v1239 = vand.u32 %v221, 4294901760
        %1240 = vmatpush1.msra.mxu0 %v1239
        %1241 = vmatprep.subr.mxu0 0.0
        %1242 = vmatpush1.msra.mxu0 0.0
        %1243 = vmatprep.subr.mxu0 0.0
        %1244 = vmatpush1.msra.mxu0 0.0
        %1245 = vmatprep.subr.mxu0 0.0
        %1246 = vmatpush1.msra.mxu0 0.0
        %1247 = vmatprep.subr.mxu0 0.0
        %1248 = vmatpush1.msra.mxu0 0.0
        %1249 = vmatprep.subr.mxu0 0.0
        %1250 = vmatpush1.msra.mxu0 0.0
        %1251 = vmatprep.subr.mxu0 0.0
        %1252 = vmatpush1.msra.mxu0 0.0
        %1253 = vmatprep.subr.mxu0 0.0
        %1254 = vmatpush1.msra.mxu0 0.0
        %1255 = vmatprep.subr.mxu0 0.0
        %1256 = vmatpush1.msra.mxu0 0.0
        %1257 = vmatprep.subr.mxu0 0.0
        %1258 = vmatpush1.msra.mxu0 0.0
        %1259 = vmatprep.subr.mxu0 0.0
        %1260 = vmatpush1.msra.mxu0 0.0
        %1261 = vmatprep.subr.mxu0 0.0
        %1262 = vmatpush1.msra.mxu0 0.0
        %1263 = vmatprep.subr.mxu0 0.0
        %1264 = vmatpush1.msra.mxu0 0.0
        %1265 = vmatprep.subr.mxu0 0.0
        %1266 = vmatpush1.msra.mxu0 0.0
        %1267 = vmatprep.subr.mxu0 0.0
        %1268 = vmatpush1.msra.mxu0 0.0
        %1269 = vmatprep.subr.mxu0 0.0
        %1270 = vmatpush1.msra.mxu0 0.0
        %1271 = vmatprep.subr.mxu0 0.0
        %1272 = vmatpush1.msra.mxu0 0.0
        %1273 = vmatprep.subr.mxu0 0.0
        %1274 = vmatpush1.msra.mxu0 0.0
        %1275 = vmatprep.subr.mxu0 0.0
        %1276 = vmatpush1.msra.mxu0 0.0
        %1277 = vmatprep.subr.mxu0 0.0
        %1278 = vmatpush1.msra.mxu0 0.0
        %1279 = vmatprep.subr.mxu0 0.0
        %1280 = vmatpush1.msra.mxu0 0.0
        %1281 = vmatprep.subr.mxu0 0.0
        %1282 = vmatpush1.msra.mxu0 0.0
        %1283 = vmatprep.subr.mxu0 0.0
        %1284 = vmatpush1.msra.mxu0 0.0
        %1285 = vmatprep.subr.mxu0 0.0
        %1286 = vmatpush1.msra.mxu0 0.0
        %1287 = vmatprep.subr.mxu0 0.0
        %1288 = vmatpush1.msra.mxu0 0.0
        %1289 = vmatprep.subr.mxu0 0.0
        %1290 = vmatpush1.msra.mxu0 0.0
        %1291 = vmatprep.subr.mxu0 0.0
        %1292 = vmatpush1.msra.mxu0 0.0
        %1293 = vmatprep.subr.mxu0 0.0
        %1294 = vmatpush1.msra.mxu0 0.0
        %1295 = vmatprep.subr.mxu0 0.0
        %1296 = vmatpush1.msra.mxu0 0.0
        %1297 = vmatprep.subr.mxu0 0.0
        %1298 = vmatpush1.msra.mxu0 0.0
        %1299 = vmatprep.subr.mxu0 0.0
        %1300 = vmatpush1.msra.mxu0 0.0
        %1301 = vmatprep.mubr.f32.mxu0 0.0
        %v1302 = vand.u32 %v251, 4294901760
        %v1303 = vsub.f32 %v251, %v1302
        %v1304 = vand.u32 %v1303, 4294901760
        %v1305 = vsub.f32 %v1303, %v1304
        %v1306 = vand.u32 %v1305, 4294901760
        %1307 = vmatmul.mubr.f32.gmra.mrb[0].mxu0 %v1306
        %v1308 = vpop.f32.mrb[0].mxu0
        %v1309 = vadd.f32 %v243, %v1308
        %v1310 = vpop.f32.mrb[0].mxu0
        %1311 = vdwg.mxu0
        %1312 = vmatprep.subr.mxu0 0.0
        %v1313 = vand.u32 %v216, 4294901760
        %v1314 = vsub.f32 %v216, %v1313
        %v1315 = vand.u32 %v1314, 4294901760
        %v1316 = vsub.f32 %v1314, %v1315
        %v1317 = vand.u32 %v1316, 4294901760
        %1318 = vmatpush1.msra.mxu0 %v1317
        %1319 = vmatprep.subr.mxu0 0.0
        %v1320 = vand.u32 %v221, 4294901760
        %v1321 = vsub.f32 %v221, %v1320
        %v1322 = vand.u32 %v1321, 4294901760
        %v1323 = vsub.f32 %v1321, %v1322
        %v1324 = vand.u32 %v1323, 4294901760
        %1325 = vmatpush1.msra.mxu0 %v1324
        %1326 = vmatprep.subr.mxu0 0.0
        %1327 = vmatpush1.msra.mxu0 0.0
        %1328 = vmatprep.subr.mxu0 0.0
        %1329 = vmatpush1.msra.mxu0 0.0
        %1330 = vmatprep.subr.mxu0 0.0
        %1331 = vmatpush1.msra.mxu0 0.0
        %1332 = vmatprep.subr.mxu0 0.0
        %1333 = vmatpush1.msra.mxu0 0.0
        %1334 = vmatprep.subr.mxu0 0.0
        %1335 = vmatpush1.msra.mxu0 0.0
        %1336 = vmatprep.subr.mxu0 0.0
        %1337 = vmatpush1.msra.mxu0 0.0
        %1338 = vmatprep.subr.mxu0 0.0
        %1339 = vmatpush1.msra.mxu0 0.0
        %1340 = vmatprep.subr.mxu0 0.0
        %1341 = vmatpush1.msra.mxu0 0.0
        %1342 = vmatprep.subr.mxu0 0.0
        %1343 = vmatpush1.msra.mxu0 0.0
        %1344 = vmatprep.subr.mxu0 0.0
        %1345 = vmatpush1.msra.mxu0 0.0
        %1346 = vmatprep.subr.mxu0 0.0
        %1347 = vmatpush1.msra.mxu0 0.0
        %1348 = vmatprep.subr.mxu0 0.0
        %1349 = vmatpush1.msra.mxu0 0.0
        %1350 = vmatprep.subr.mxu0 0.0
        %1351 = vmatpush1.msra.mxu0 0.0
        %1352 = vmatprep.subr.mxu0 0.0
        %1353 = vmatpush1.msra.mxu0 0.0
        %1354 = vmatprep.subr.mxu0 0.0
        %1355 = vmatpush1.msra.mxu0 0.0
        %1356 = vmatprep.subr.mxu0 0.0
        %1357 = vmatpush1.msra.mxu0 0.0
        %1358 = vmatprep.subr.mxu0 0.0
        %1359 = vmatpush1.msra.mxu0 0.0
        %1360 = vmatprep.subr.mxu0 0.0
        %1361 = vmatpush1.msra.mxu0 0.0
        %1362 = vmatprep.subr.mxu0 0.0
        %1363 = vmatpush1.msra.mxu0 0.0
        %1364 = vmatprep.subr.mxu0 0.0
        %1365 = vmatpush1.msra.mxu0 0.0
        %1366 = vmatprep.subr.mxu0 0.0
        %1367 = vmatpush1.msra.mxu0 0.0
        %1368 = vmatprep.subr.mxu0 0.0
        %1369 = vmatpush1.msra.mxu0 0.0
        %1370 = vmatprep.subr.mxu0 0.0
        %1371 = vmatpush1.msra.mxu0 0.0
        %1372 = vmatprep.subr.mxu0 0.0
        %1373 = vmatpush1.msra.mxu0 0.0
        %1374 = vmatprep.subr.mxu0 0.0
        %1375 = vmatpush1.msra.mxu0 0.0
        %1376 = vmatprep.subr.mxu0 0.0
        %1377 = vmatpush1.msra.mxu0 0.0
        %1378 = vmatprep.subr.mxu0 0.0
        %1379 = vmatpush1.msra.mxu0 0.0
        %1380 = vmatprep.subr.mxu0 0.0
        %1381 = vmatpush1.msra.mxu0 0.0
        %1382 = vmatprep.subr.mxu0 0.0
        %1383 = vmatpush1.msra.mxu0 0.0
        %1384 = vmatprep.subr.mxu0 0.0
        %1385 = vmatpush1.msra.mxu0 0.0
        %1386 = vmatprep.mubr.f32.mxu0 0.0
        %v1387 = vand.u32 %v251, 4294901760
        %1388 = vmatmul.mubr.f32.gmra.mrb[0].mxu0 %v1387
        %v1389 = vpop.f32.mrb[0].mxu0
        %v1390 = vadd.f32 %v1309, %v1389
        %v1391 = vpop.f32.mrb[0].mxu0
        %1392 = vdwg.mxu0
        %1393 = vmatprep.subr.mxu0 0.0
        %v1394 = vand.u32 %v216, 4294901760
        %v1395 = vsub.f32 %v216, %v1394
        %1396 = vmatpush1.msra.mxu0 %v1395
        %1397 = vmatprep.subr.mxu0 0.0
        %v1398 = vand.u32 %v221, 4294901760
        %v1399 = vsub.f32 %v221, %v1398
        %1400 = vmatpush1.msra.mxu0 %v1399
        %1401 = vmatprep.subr.mxu0 0.0
        %1402 = vmatpush1.msra.mxu0 0.0
        %1403 = vmatprep.subr.mxu0 0.0
        %1404 = vmatpush1.msra.mxu0 0.0
        %1405 = vmatprep.subr.mxu0 0.0
        %1406 = vmatpush1.msra.mxu0 0.0
        %1407 = vmatprep.subr.mxu0 0.0
        %1408 = vmatpush1.msra.mxu0 0.0
        %1409 = vmatprep.subr.mxu0 0.0
        %1410 = vmatpush1.msra.mxu0 0.0
        %1411 = vmatprep.subr.mxu0 0.0
        %1412 = vmatpush1.msra.mxu0 0.0
        %1413 = vmatprep.subr.mxu0 0.0
        %1414 = vmatpush1.msra.mxu0 0.0
        %1415 = vmatprep.subr.mxu0 0.0
        %1416 = vmatpush1.msra.mxu0 0.0
        %1417 = vmatprep.subr.mxu0 0.0
        %1418 = vmatpush1.msra.mxu0 0.0
        %1419 = vmatprep.subr.mxu0 0.0
        %1420 = vmatpush1.msra.mxu0 0.0
        %1421 = vmatprep.subr.mxu0 0.0
        %1422 = vmatpush1.msra.mxu0 0.0
        %1423 = vmatprep.subr.mxu0 0.0
        %1424 = vmatpush1.msra.mxu0 0.0
        %1425 = vmatprep.subr.mxu0 0.0
        %1426 = vmatpush1.msra.mxu0 0.0
        %1427 = vmatprep.subr.mxu0 0.0
        %1428 = vmatpush1.msra.mxu0 0.0
        %1429 = vmatprep.subr.mxu0 0.0
        %1430 = vmatpush1.msra.mxu0 0.0
        %1431 = vmatprep.subr.mxu0 0.0
        %1432 = vmatpush1.msra.mxu0 0.0
        %1433 = vmatprep.subr.mxu0 0.0
        %1434 = vmatpush1.msra.mxu0 0.0
        %1435 = vmatprep.subr.mxu0 0.0
        %1436 = vmatpush1.msra.mxu0 0.0
        %1437 = vmatprep.subr.mxu0 0.0
        %1438 = vmatpush1.msra.mxu0 0.0
        %1439 = vmatprep.subr.mxu0 0.0
        %1440 = vmatpush1.msra.mxu0 0.0
        %1441 = vmatprep.subr.mxu0 0.0
        %1442 = vmatpush1.msra.mxu0 0.0
        %1443 = vmatprep.subr.mxu0 0.0
        %1444 = vmatpush1.msra.mxu0 0.0
        %1445 = vmatprep.subr.mxu0 0.0
        %1446 = vmatpush1.msra.mxu0 0.0
        %1447 = vmatprep.subr.mxu0 0.0
        %1448 = vmatpush1.msra.mxu0 0.0
        %1449 = vmatprep.subr.mxu0 0.0
        %1450 = vmatpush1.msra.mxu0 0.0
        %1451 = vmatprep.subr.mxu0 0.0
        %1452 = vmatpush1.msra.mxu0 0.0
        %1453 = vmatprep.subr.mxu0 0.0
        %1454 = vmatpush1.msra.mxu0 0.0
        %1455 = vmatprep.subr.mxu0 0.0
        %1456 = vmatpush1.msra.mxu0 0.0
        %1457 = vmatprep.subr.mxu0 0.0
        %1458 = vmatpush1.msra.mxu0 0.0
        %1459 = vmatprep.subr.mxu0 0.0
        %1460 = vmatpush1.msra.mxu0 0.0
        %1461 = vmatprep.mubr.f32.mxu0 0.0
        %v1462 = vand.u32 %v251, 4294901760
        %v1463 = vsub.f32 %v251, %v1462
        %1464 = vmatmul.mubr.f32.gmra.mrb[0].mxu0 %v1463
        %v1465 = vpop.f32.mrb[0].mxu0
        %v1466 = vadd.f32 %v1390, %v1465
        %v1467 = vpop.f32.mrb[0].mxu0
        %1468 = vdwg.mxu0
        %1469 = vmatprep.subr.mxu0 0.0
        %v1470 = vand.u32 %v216, 4294901760
        %1471 = vmatpush1.msra.mxu0 %v1470
        %1472 = vmatprep.subr.mxu0 0.0
        %v1473 = vand.u32 %v221, 4294901760
        %1474 = vmatpush1.msra.mxu0 %v1473
        %1475 = vmatprep.subr.mxu0 0.0
        %1476 = vmatpush1.msra.mxu0 0.0
        %1477 = vmatprep.subr.mxu0 0.0
        %1478 = vmatpush1.msra.mxu0 0.0
        %1479 = vmatprep.subr.mxu0 0.0
        %1480 = vmatpush1.msra.mxu0 0.0
        %1481 = vmatprep.subr.mxu0 0.0
        %1482 = vmatpush1.msra.mxu0 0.0
        %1483 = vmatprep.subr.mxu0 0.0
        %1484 = vmatpush1.msra.mxu0 0.0
        %1485 = vmatprep.subr.mxu0 0.0
        %1486 = vmatpush1.msra.mxu0 0.0
        %1487 = vmatprep.subr.mxu0 0.0
        %1488 = vmatpush1.msra.mxu0 0.0
        %1489 = vmatprep.subr.mxu0 0.0
        %1490 = vmatpush1.msra.mxu0 0.0
        %1491 = vmatprep.subr.mxu0 0.0
        %1492 = vmatpush1.msra.mxu0 0.0
        %1493 = vmatprep.subr.mxu0 0.0
        %1494 = vmatpush1.msra.mxu0 0.0
        %1495 = vmatprep.subr.mxu0 0.0
        %1496 = vmatpush1.msra.mxu0 0.0
        %1497 = vmatprep.subr.mxu0 0.0
        %1498 = vmatpush1.msra.mxu0 0.0
        %1499 = vmatprep.subr.mxu0 0.0
        %1500 = vmatpush1.msra.mxu0 0.0
        %1501 = vmatprep.subr.mxu0 0.0
        %1502 = vmatpush1.msra.mxu0 0.0
        %1503 = vmatprep.subr.mxu0 0.0
        %1504 = vmatpush1.msra.mxu0 0.0
        %1505 = vmatprep.subr.mxu0 0.0
        %1506 = vmatpush1.msra.mxu0 0.0
        %1507 = vmatprep.subr.mxu0 0.0
        %1508 = vmatpush1.msra.mxu0 0.0
        %1509 = vmatprep.subr.mxu0 0.0
        %1510 = vmatpush1.msra.mxu0 0.0
        %1511 = vmatprep.subr.mxu0 0.0
        %1512 = vmatpush1.msra.mxu0 0.0
        %1513 = vmatprep.subr.mxu0 0.0
        %1514 = vmatpush1.msra.mxu0 0.0
        %1515 = vmatprep.subr.mxu0 0.0
        %1516 = vmatpush1.msra.mxu0 0.0
        %1517 = vmatprep.subr.mxu0 0.0
        %1518 = vmatpush1.msra.mxu0 0.0
        %1519 = vmatprep.subr.mxu0 0.0
        %1520 = vmatpush1.msra.mxu0 0.0
        %1521 = vmatprep.subr.mxu0 0.0
        %1522 = vmatpush1.msra.mxu0 0.0
        %1523 = vmatprep.subr.mxu0 0.0
        %1524 = vmatpush1.msra.mxu0 0.0
        %1525 = vmatprep.subr.mxu0 0.0
        %1526 = vmatpush1.msra.mxu0 0.0
        %1527 = vmatprep.subr.mxu0 0.0
        %1528 = vmatpush1.msra.mxu0 0.0
        %1529 = vmatprep.subr.mxu0 0.0
        %1530 = vmatpush1.msra.mxu0 0.0
        %1531 = vmatprep.subr.mxu0 0.0
        %1532 = vmatpush1.msra.mxu0 0.0
        %1533 = vmatprep.subr.mxu0 0.0
        %1534 = vmatpush1.msra.mxu0 0.0
        %1535 = vmatprep.mubr.f32.mxu0 0.0
        %v1536 = vand.u32 %v251, 4294901760
        %v1537 = vsub.f32 %v251, %v1536
        %v1538 = vand.u32 %v1537, 4294901760
        %1539 = vmatmul.mubr.f32.gmra.mrb[0].mxu0 %v1538
        %v1540 = vpop.f32.mrb[0].mxu0
        %v1541 = vadd.f32 %v1466, %v1540
        %v1542 = vpop.f32.mrb[0].mxu0
        %1543 = vdwg.mxu0
        %1544 = vmatprep.subr.mxu0 0.0
        %v1545 = vand.u32 %v216, 4294901760
        %v1546 = vsub.f32 %v216, %v1545
        %v1547 = vand.u32 %v1546, 4294901760
        %1548 = vmatpush1.msra.mxu0 %v1547
        %1549 = vmatprep.subr.mxu0 0.0
        %v1550 = vand.u32 %v221, 4294901760
        %v1551 = vsub.f32 %v221, %v1550
        %v1552 = vand.u32 %v1551, 4294901760
        %1553 = vmatpush1.msra.mxu0 %v1552
        %1554 = vmatprep.subr.mxu0 0.0
        %1555 = vmatpush1.msra.mxu0 0.0
        %1556 = vmatprep.subr.mxu0 0.0
        %1557 = vmatpush1.msra.mxu0 0.0
        %1558 = vmatprep.subr.mxu0 0.0
        %1559 = vmatpush1.msra.mxu0 0.0
        %1560 = vmatprep.subr.mxu0 0.0
        %1561 = vmatpush1.msra.mxu0 0.0
        %1562 = vmatprep.subr.mxu0 0.0
        %1563 = vmatpush1.msra.mxu0 0.0
        %1564 = vmatprep.subr.mxu0 0.0
        %1565 = vmatpush1.msra.mxu0 0.0
        %1566 = vmatprep.subr.mxu0 0.0
        %1567 = vmatpush1.msra.mxu0 0.0
        %1568 = vmatprep.subr.mxu0 0.0
        %1569 = vmatpush1.msra.mxu0 0.0
        %1570 = vmatprep.subr.mxu0 0.0
        %1571 = vmatpush1.msra.mxu0 0.0
        %1572 = vmatprep.subr.mxu0 0.0
        %1573 = vmatpush1.msra.mxu0 0.0
        %1574 = vmatprep.subr.mxu0 0.0
        %1575 = vmatpush1.msra.mxu0 0.0
        %1576 = vmatprep.subr.mxu0 0.0
        %1577 = vmatpush1.msra.mxu0 0.0
        %1578 = vmatprep.subr.mxu0 0.0
        %1579 = vmatpush1.msra.mxu0 0.0
        %1580 = vmatprep.subr.mxu0 0.0
        %1581 = vmatpush1.msra.mxu0 0.0
        %1582 = vmatprep.subr.mxu0 0.0
        %1583 = vmatpush1.msra.mxu0 0.0
        %1584 = vmatprep.subr.mxu0 0.0
        %1585 = vmatpush1.msra.mxu0 0.0
        %1586 = vmatprep.subr.mxu0 0.0
        %1587 = vmatpush1.msra.mxu0 0.0
        %1588 = vmatprep.subr.mxu0 0.0
        %1589 = vmatpush1.msra.mxu0 0.0
        %1590 = vmatprep.subr.mxu0 0.0
        %1591 = vmatpush1.msra.mxu0 0.0
        %1592 = vmatprep.subr.mxu0 0.0
        %1593 = vmatpush1.msra.mxu0 0.0
        %1594 = vmatprep.subr.mxu0 0.0
        %1595 = vmatpush1.msra.mxu0 0.0
        %1596 = vmatprep.subr.mxu0 0.0
        %1597 = vmatpush1.msra.mxu0 0.0
        %1598 = vmatprep.subr.mxu0 0.0
        %1599 = vmatpush1.msra.mxu0 0.0
        %1600 = vmatprep.subr.mxu0 0.0
        %1601 = vmatpush1.msra.mxu0 0.0
        %1602 = vmatprep.subr.mxu0 0.0
        %1603 = vmatpush1.msra.mxu0 0.0
        %1604 = vmatprep.subr.mxu0 0.0
        %1605 = vmatpush1.msra.mxu0 0.0
        %1606 = vmatprep.subr.mxu0 0.0
        %1607 = vmatpush1.msra.mxu0 0.0
        %1608 = vmatprep.subr.mxu0 0.0
        %1609 = vmatpush1.msra.mxu0 0.0
        %1610 = vmatprep.subr.mxu0 0.0
        %1611 = vmatpush1.msra.mxu0 0.0
        %1612 = vmatprep.subr.mxu0 0.0
        %1613 = vmatpush1.msra.mxu0 0.0
        %1614 = vmatprep.mubr.f32.mxu0 0.0
        %v1615 = vand.u32 %v251, 4294901760
        %1616 = vmatmul.mubr.f32.gmra.mrb[0].mxu0 %v1615
        %v1617 = vpop.f32.mrb[0].mxu0
        %v1618 = vadd.f32 %v1541, %v1617
        %v1619 = vpop.f32.mrb[0].mxu0
        %1620 = vdwg.mxu0
        %1621 = vmatprep.subr.mxu0 0.0
        %v1622 = vand.u32 %v216, 4294901760
        %1623 = vmatpush1.msra.mxu0 %v1622
        %1624 = vmatprep.subr.mxu0 0.0
        %v1625 = vand.u32 %v221, 4294901760
        %1626 = vmatpush1.msra.mxu0 %v1625
        %1627 = vmatprep.subr.mxu0 0.0
        %1628 = vmatpush1.msra.mxu0 0.0
        %1629 = vmatprep.subr.mxu0 0.0
        %1630 = vmatpush1.msra.mxu0 0.0
        %1631 = vmatprep.subr.mxu0 0.0
        %1632 = vmatpush1.msra.mxu0 0.0
        %1633 = vmatprep.subr.mxu0 0.0
        %1634 = vmatpush1.msra.mxu0 0.0
        %1635 = vmatprep.subr.mxu0 0.0
        %1636 = vmatpush1.msra.mxu0 0.0
        %1637 = vmatprep.subr.mxu0 0.0
        %1638 = vmatpush1.msra.mxu0 0.0
        %1639 = vmatprep.subr.mxu0 0.0
        %1640 = vmatpush1.msra.mxu0 0.0
        %1641 = vmatprep.subr.mxu0 0.0
        %1642 = vmatpush1.msra.mxu0 0.0
        %1643 = vmatprep.subr.mxu0 0.0
        %1644 = vmatpush1.msra.mxu0 0.0
        %1645 = vmatprep.subr.mxu0 0.0
        %1646 = vmatpush1.msra.mxu0 0.0
        %1647 = vmatprep.subr.mxu0 0.0
        %1648 = vmatpush1.msra.mxu0 0.0
        %1649 = vmatprep.subr.mxu0 0.0
        %1650 = vmatpush1.msra.mxu0 0.0
        %1651 = vmatprep.subr.mxu0 0.0
        %1652 = vmatpush1.msra.mxu0 0.0
        %1653 = vmatprep.subr.mxu0 0.0
        %1654 = vmatpush1.msra.mxu0 0.0
        %1655 = vmatprep.subr.mxu0 0.0
        %1656 = vmatpush1.msra.mxu0 0.0
        %1657 = vmatprep.subr.mxu0 0.0
        %1658 = vmatpush1.msra.mxu0 0.0
        %1659 = vmatprep.subr.mxu0 0.0
        %1660 = vmatpush1.msra.mxu0 0.0
        %1661 = vmatprep.subr.mxu0 0.0
        %1662 = vmatpush1.msra.mxu0 0.0
        %1663 = vmatprep.subr.mxu0 0.0
        %1664 = vmatpush1.msra.mxu0 0.0
        %1665 = vmatprep.subr.mxu0 0.0
        %1666 = vmatpush1.msra.mxu0 0.0
        %1667 = vmatprep.subr.mxu0 0.0
        %1668 = vmatpush1.msra.mxu0 0.0
        %1669 = vmatprep.subr.mxu0 0.0
        %1670 = vmatpush1.msra.mxu0 0.0
        %1671 = vmatprep.subr.mxu0 0.0
        %1672 = vmatpush1.msra.mxu0 0.0
        %1673 = vmatprep.subr.mxu0 0.0
        %1674 = vmatpush1.msra.mxu0 0.0
        %1675 = vmatprep.subr.mxu0 0.0
        %1676 = vmatpush1.msra.mxu0 0.0
        %1677 = vmatprep.subr.mxu0 0.0
        %1678 = vmatpush1.msra.mxu0 0.0
        %1679 = vmatprep.subr.mxu0 0.0
        %1680 = vmatpush1.msra.mxu0 0.0
        %1681 = vmatprep.subr.mxu0 0.0
        %1682 = vmatpush1.msra.mxu0 0.0
        %1683 = vmatprep.subr.mxu0 0.0
        %1684 = vmatpush1.msra.mxu0 0.0
        %1685 = vmatprep.subr.mxu0 0.0
        %1686 = vmatpush1.msra.mxu0 0.0
        %1687 = vmatprep.mubr.f32.mxu0 0.0
        %v1688 = vand.u32 %v251, 4294901760
        %1689 = vmatmul.mubr.f32.gmra.mrb[0].mxu0 %v1688
        %v1690 = vpop.f32.mrb[0].mxu0
        %v1691 = vadd.f32 %v1618, %v1690
        %v1692 = vpop.f32.mrb[0].mxu0
        %1693 = vdwg.mxu0
        %v1694 = vand.u32 2147483647, %v740
        %vm1695 = vcmp.le.f32.partialorder %v1694, 0.7853982
        %vm1696 = vcmp.lt.s32.totalorder %v740, 0
        %v1697 = vand.u32 %v740, 2139095040
        %v1698 = vshrl.u32 %v1697, 23
        %v1699 = vsub.s32 %v1698, 127
        %v1700 = vand.u32 2147483647, %v740
        %v1701 = vand.u32 %v1700, 8388607
        %v1702 = vor.u32 %v1701, 8388608
        %v1703 = vsub.s32 0, %v1702
        %v1704 = vadd.s32 %v1699, 1
        %vm1705 = vcmp.gt.s32.totalorder %v1704, 0
        %v1706 = vsel %vm1705, %v1704, 0
        %v1707 = vshrl.u32 %v1706, 5
        %v1708 = vand.u32 %v1706, 31
        %v1709 = vsub.s32 32, %v1708
        %v1710 = vshrl.u32 683565275, %v1709
        %v1711 = vshll.u32 683565275, %v1708
        %v1712 = vshrl.u32 2475754826, %v1709
        %v1713 = vor.u32 %v1711, %v1712
        %v1714 = vshll.u32 2475754826, %v1708
        %v1715 = vshrl.u32 2131351028, %v1709
        %v1716 = vor.u32 %v1714, %v1715
        %v1717 = vshll.u32 2131351028, %v1708
        %v1718 = vshrl.u32 2102212464, %v1709
        %v1719 = vor.u32 %v1717, %v1718
        %v1720 = vshll.u32 2102212464, %v1708
        %v1721 = vshrl.u32 920167782, %v1709
        %v1722 = vor.u32 %v1720, %v1721
        %v1723 = vshll.u32 920167782, %v1708
        %v1724 = vshrl.u32 1326507024, %v1709
        %v1725 = vor.u32 %v1723, %v1724
        %vm1726 = vcmp.lt.s32.totalorder %v1707, 1
        %vm1727 = vcmp.lt.s32.totalorder %v1707, 2
        %vm1728 = vcmp.lt.s32.totalorder %v1707, 3
        %vm1729 = vcmp.lt.s32.totalorder %v1707, 4
        %v1730 = vsel %vm1726, %v1710, %v1713
        %v1731 = vsel %vm1729, %v1719, 2102212464
        %v1732 = vsel %vm1728, %v1716, %v1731
        %v1733 = vsel %vm1727, %v1730, %v1732
        %v1734 = vsel %vm1726, %v1713, %v1716
        %v1735 = vsel %vm1729, %v1722, 920167782
        %v1736 = vsel %vm1728, %v1719, %v1735
        %v1737 = vsel %vm1727, %v1734, %v1736
        %v1738 = vsel %vm1726, %v1716, %v1719
        %v1739 = vsel %vm1729, %v1725, 1326507024
        %v1740 = vsel %vm1728, %v1722, %v1739
        %v1741 = vsel %vm1727, %v1738, %v1740
        %v1742 = vshll.u32 %v1702, 8
        %v1743 = vmul.u32.u64.compose %v1742, %v1741
        %v1744 = vextract.low.u32 %v1743
        %v1745 = vextract.high.u32 %v1743
        %v1746 = vmul.u32.u64.compose %v1742, %v1737
        %v1747 = vextract.low.u32 %v1746
        %v1748 = vextract.high.u32 %v1746
        %v1749 = vmul.u32 %v1742, %v1733
        %v1750 = vadd.s32 %v1745, %v1747
        %vm1751 = vc.u32 %v1745, %v1747
        %v1752 = vadd.s32 %v1748, 1
        %v1753 = vsel %vm1751, %v1752, %v1748
        %v1754 = vadd.s32 %v1749, %v1753
        %v1755 = vadd.s32 %v1754, 536870912
        %v1756 = vshrl.u32 %v1755, 30
        %v1757 = vshll.u32 %v1756, 30
        %v1758 = vsub.s32 %v1754, %v1757
        %vm1759 = vcmp.lt.s32.totalorder %v1758, 0
        %v1760 = vsub.s32 0, %v1758
        %v1761 = vsel %vm1759, %v1760, %v1758
        %v1762 = vclz %v1761
        %v1763 = vsub.s32 %v1762, 2
        %vm1764 = vcmp.gt.s32.totalorder 0, %v1763
        %v1765 = vsel %vm1764, 0, %v1763
        %v1766 = vsub.s32 32, %v1765
        %v1767 = vshll.u32 %v1758, %v1765
        %v1768 = vshrl.u32 %v1750, %v1766
        %v1769 = vor.u32 %v1767, %v1768
        %v1770 = vsub.s32 4294967266, %v1765
        %v1771 = vadd.s32 %v1770, 127
        %v1772 = vshll.u32 %v1771, 23
        %v1773 = vor.u32 4788187, %v1772
        %v1774 = vand.u32 2147483647, %v1773
        %v1776 = vcvt.s32.f32 %v1769
        %v1777 = vmul.f32 %v1776, %v1774
        %v1778 = vxor.u32 %v1777, 2147483648
        %v1779 = vsel %vm1696, %v1778, %v1777
        %v1780 = vsub.s32 4, %v1756
        %v1781 = vsel %vm1696, %v1780, %v1756
        %v1782 = vsel %vm1695, %v740, %v1779
        %v1783 = vsel %vm1695, 0, %v1781
        %v1784 = vcosq.f32.pop %v1782
        %v1785 = vsinq.f32.pop %v1782
        %vm1786 = vweird.f32 %v740
        %v1787 = vadd.s32 %v1783, 3
        %v1788 = vand.u32 %v1787, 3
        %vm1789 = vcmp.lt.s32.totalorder %v1788, 2
        %vm1790 = vcmp.eq.s32.totalorder %v1788, 0
        %v1791 = vxor.u32 %v1785, 2147483648
        %v1792 = vsel %vm1790, %v1784, %v1791
        %vm1793 = vcmp.eq.s32.totalorder %v1788, 2
        %v1794 = vxor.u32 %v1784, 2147483648
        %v1795 = vsel %vm1793, %v1794, %v1785
        %v1796 = vsel %vm1789, %v1792, %v1795
        %v1797 = vsel %vm1786, nan, %v1796
        %v1798 = vand.u32 2147483647, %v742
        %vm1799 = vcmp.le.f32.partialorder %v1798, 0.7853982
        %vm1800 = vcmp.lt.s32.totalorder %v742, 0
        %v1801 = vand.u32 %v742, 2139095040
        %v1802 = vshrl.u32 %v1801, 23
        %v1803 = vsub.s32 %v1802, 127
        %v1804 = vand.u32 2147483647, %v742
        %v1805 = vand.u32 %v1804, 8388607
        %v1806 = vor.u32 %v1805, 8388608
        %v1807 = vsub.s32 0, %v1806
        %v1808 = vadd.s32 %v1803, 1
        %vm1809 = vcmp.gt.s32.totalorder %v1808, 0
        %v1810 = vsel %vm1809, %v1808, 0
        %v1811 = vshrl.u32 %v1810, 5
        %v1812 = vand.u32 %v1810, 31
        %v1813 = vsub.s32 32, %v1812
        %v1814 = vshrl.u32 683565275, %v1813
        %v1815 = vshll.u32 683565275, %v1812
        %v1816 = vshrl.u32 2475754826, %v1813
        %v1817 = vor.u32 %v1815, %v1816
        %v1818 = vshll.u32 2475754826, %v1812
        %v1819 = vshrl.u32 2131351028, %v1813
        %v1820 = vor.u32 %v1818, %v1819
        %v1821 = vshll.u32 2131351028, %v1812
        %v1822 = vshrl.u32 2102212464, %v1813
        %v1823 = vor.u32 %v1821, %v1822
        %v1824 = vshll.u32 2102212464, %v1812
        %v1825 = vshrl.u32 920167782, %v1813
        %v1826 = vor.u32 %v1824, %v1825
        %v1827 = vshll.u32 920167782, %v1812
        %v1828 = vshrl.u32 1326507024, %v1813
        %v1829 = vor.u32 %v1827, %v1828
        %vm1830 = vcmp.lt.s32.totalorder %v1811, 1
        %vm1831 = vcmp.lt.s32.totalorder %v1811, 2
        %vm1832 = vcmp.lt.s32.totalorder %v1811, 3
        %vm1833 = vcmp.lt.s32.totalorder %v1811, 4
        %v1834 = vsel %vm1830, %v1814, %v1817
        %v1835 = vsel %vm1833, %v1823, 2102212464
        %v1836 = vsel %vm1832, %v1820, %v1835
        %v1837 = vsel %vm1831, %v1834, %v1836
        %v1838 = vsel %vm1830, %v1817, %v1820
        %v1839 = vsel %vm1833, %v1826, 920167782
        %v1840 = vsel %vm1832, %v1823, %v1839
        %v1841 = vsel %vm1831, %v1838, %v1840
        %v1842 = vsel %vm1830, %v1820, %v1823
        %v1843 = vsel %vm1833, %v1829, 1326507024
        %v1844 = vsel %vm1832, %v1826, %v1843
        %v1845 = vsel %vm1831, %v1842, %v1844
        %v1846 = vshll.u32 %v1806, 8
        %v1847 = vmul.u32.u64.compose %v1846, %v1845
        %v1848 = vextract.low.u32 %v1847
        %v1849 = vextract.high.u32 %v1847
        %v1850 = vmul.u32.u64.compose %v1846, %v1841
        %v1851 = vextract.low.u32 %v1850
        %v1852 = vextract.high.u32 %v1850
        %v1853 = vmul.u32 %v1846, %v1837
        %v1854 = vadd.s32 %v1849, %v1851
        %vm1855 = vc.u32 %v1849, %v1851
        %v1856 = vadd.s32 %v1852, 1
        %v1857 = vsel %vm1855, %v1856, %v1852
        %v1858 = vadd.s32 %v1853, %v1857
        %v1859 = vadd.s32 %v1858, 536870912
        %v1860 = vshrl.u32 %v1859, 30
        %v1861 = vshll.u32 %v1860, 30
        %v1862 = vsub.s32 %v1858, %v1861
        %vm1863 = vcmp.lt.s32.totalorder %v1862, 0
        %v1864 = vsub.s32 0, %v1862
        %v1865 = vsel %vm1863, %v1864, %v1862
        %v1866 = vclz %v1865
        %v1867 = vsub.s32 %v1866, 2
        %vm1868 = vcmp.gt.s32.totalorder 0, %v1867
        %v1869 = vsel %vm1868, 0, %v1867
        %v1870 = vsub.s32 32, %v1869
        %v1871 = vshll.u32 %v1862, %v1869
        %v1872 = vshrl.u32 %v1854, %v1870
        %v1873 = vor.u32 %v1871, %v1872
        %v1874 = vsub.s32 4294967266, %v1869
        %v1875 = vadd.s32 %v1874, 127
        %v1876 = vshll.u32 %v1875, 23
        %v1877 = vor.u32 4788187, %v1876
        %v1878 = vand.u32 2147483647, %v1877
        %v1880 = vcvt.s32.f32 %v1873
        %v1881 = vmul.f32 %v1880, %v1878
        %v1882 = vxor.u32 %v1881, 2147483648
        %v1883 = vsel %vm1800, %v1882, %v1881
        %v1884 = vsub.s32 4, %v1860
        %v1885 = vsel %vm1800, %v1884, %v1860
        %v1886 = vsel %vm1799, %v742, %v1883
        %v1887 = vsel %vm1799, 0, %v1885
        %v1888 = vcosq.f32.pop %v1886
        %v1889 = vsinq.f32.pop %v1886
        %vm1890 = vweird.f32 %v742
        %v1891 = vadd.s32 %v1887, 3
        %v1892 = vand.u32 %v1891, 3
        %vm1893 = vcmp.lt.s32.totalorder %v1892, 2
        %vm1894 = vcmp.eq.s32.totalorder %v1892, 0
        %v1895 = vxor.u32 %v1889, 2147483648
        %v1896 = vsel %vm1894, %v1888, %v1895
        %vm1897 = vcmp.eq.s32.totalorder %v1892, 2
        %v1898 = vxor.u32 %v1888, 2147483648
        %v1899 = vsel %vm1897, %v1898, %v1889
        %v1900 = vsel %vm1893, %v1896, %v1899
        %v1901 = vsel %vm1890, nan, %v1900
        %v1902 = vand.u32 2147483647, %v1231
        %vm1903 = vcmp.le.f32.partialorder %v1902, 0.7853982
        %vm1904 = vcmp.lt.s32.totalorder %v1231, 0
        %v1905 = vand.u32 %v1231, 2139095040
        %v1906 = vshrl.u32 %v1905, 23
        %v1907 = vsub.s32 %v1906, 127
        %v1908 = vand.u32 2147483647, %v1231
        %v1909 = vand.u32 %v1908, 8388607
        %v1910 = vor.u32 %v1909, 8388608
        %v1911 = vsub.s32 0, %v1910
        %v1912 = vadd.s32 %v1907, 1
        %vm1913 = vcmp.gt.s32.totalorder %v1912, 0
        %v1914 = vsel %vm1913, %v1912, 0
        %v1915 = vshrl.u32 %v1914, 5
        %v1916 = vand.u32 %v1914, 31
        %v1917 = vsub.s32 32, %v1916
        %v1918 = vshrl.u32 683565275, %v1917
        %v1919 = vshll.u32 683565275, %v1916
        %v1920 = vshrl.u32 2475754826, %v1917
        %v1921 = vor.u32 %v1919, %v1920
        %v1922 = vshll.u32 2475754826, %v1916
        %v1923 = vshrl.u32 2131351028, %v1917
        %v1924 = vor.u32 %v1922, %v1923
        %v1925 = vshll.u32 2131351028, %v1916
        %v1926 = vshrl.u32 2102212464, %v1917
        %v1927 = vor.u32 %v1925, %v1926
        %v1928 = vshll.u32 2102212464, %v1916
        %v1929 = vshrl.u32 920167782, %v1917
        %v1930 = vor.u32 %v1928, %v1929
        %v1931 = vshll.u32 920167782, %v1916
        %v1932 = vshrl.u32 1326507024, %v1917
        %v1933 = vor.u32 %v1931, %v1932
        %vm1934 = vcmp.lt.s32.totalorder %v1915, 1
        %vm1935 = vcmp.lt.s32.totalorder %v1915, 2
        %vm1936 = vcmp.lt.s32.totalorder %v1915, 3
        %vm1937 = vcmp.lt.s32.totalorder %v1915, 4
        %v1938 = vsel %vm1934, %v1918, %v1921
        %v1939 = vsel %vm1937, %v1927, 2102212464
        %v1940 = vsel %vm1936, %v1924, %v1939
        %v1941 = vsel %vm1935, %v1938, %v1940
        %v1942 = vsel %vm1934, %v1921, %v1924
        %v1943 = vsel %vm1937, %v1930, 920167782
        %v1944 = vsel %vm1936, %v1927, %v1943
        %v1945 = vsel %vm1935, %v1942, %v1944
        %v1946 = vsel %vm1934, %v1924, %v1927
        %v1947 = vsel %vm1937, %v1933, 1326507024
        %v1948 = vsel %vm1936, %v1930, %v1947
        %v1949 = vsel %vm1935, %v1946, %v1948
        %v1950 = vshll.u32 %v1910, 8
        %v1951 = vmul.u32.u64.compose %v1950, %v1949
        %v1952 = vextract.low.u32 %v1951
        %v1953 = vextract.high.u32 %v1951
        %v1954 = vmul.u32.u64.compose %v1950, %v1945
        %v1955 = vextract.low.u32 %v1954
        %v1956 = vextract.high.u32 %v1954
        %v1957 = vmul.u32 %v1950, %v1941
        %v1958 = vadd.s32 %v1953, %v1955
        %vm1959 = vc.u32 %v1953, %v1955
        %v1960 = vadd.s32 %v1956, 1
        %v1961 = vsel %vm1959, %v1960, %v1956
        %v1962 = vadd.s32 %v1957, %v1961
        %v1963 = vadd.s32 %v1962, 536870912
        %v1964 = vshrl.u32 %v1963, 30
        %v1965 = vshll.u32 %v1964, 30
        %v1966 = vsub.s32 %v1962, %v1965
        %vm1967 = vcmp.lt.s32.totalorder %v1966, 0
        %v1968 = vsub.s32 0, %v1966
        %v1969 = vsel %vm1967, %v1968, %v1966
        %v1970 = vclz %v1969
        %v1971 = vsub.s32 %v1970, 2
        %vm1972 = vcmp.gt.s32.totalorder 0, %v1971
        %v1973 = vsel %vm1972, 0, %v1971
        %v1974 = vsub.s32 32, %v1973
        %v1975 = vshll.u32 %v1966, %v1973
        %v1976 = vshrl.u32 %v1958, %v1974
        %v1977 = vor.u32 %v1975, %v1976
        %v1978 = vsub.s32 4294967266, %v1973
        %v1979 = vadd.s32 %v1978, 127
        %v1980 = vshll.u32 %v1979, 23
        %v1981 = vor.u32 4788187, %v1980
        %v1982 = vand.u32 2147483647, %v1981
        %v1984 = vcvt.s32.f32 %v1977
        %v1985 = vmul.f32 %v1984, %v1982
        %v1986 = vxor.u32 %v1985, 2147483648
        %v1987 = vsel %vm1904, %v1986, %v1985
        %v1988 = vsub.s32 4, %v1964
        %v1989 = vsel %vm1904, %v1988, %v1964
        %v1990 = vsel %vm1903, %v1231, %v1987
        %v1991 = vsel %vm1903, 0, %v1989
        %v1992 = vcosq.f32.pop %v1990
        %v1993 = vsinq.f32.pop %v1990
        %vm1994 = vweird.f32 %v1231
        %v1995 = vadd.s32 %v1991, 3
        %v1996 = vand.u32 %v1995, 3
        %vm1997 = vcmp.lt.s32.totalorder %v1996, 2
        %vm1998 = vcmp.eq.s32.totalorder %v1996, 0
        %v1999 = vxor.u32 %v1993, 2147483648
        %v2000 = vsel %vm1998, %v1992, %v1999
        %vm2001 = vcmp.eq.s32.totalorder %v1996, 2
        %v2002 = vxor.u32 %v1992, 2147483648
        %v2003 = vsel %vm2001, %v2002, %v1993
        %v2004 = vsel %vm1997, %v2000, %v2003
        %v2005 = vsel %vm1994, nan, %v2004
        %v2006 = vand.u32 2147483647, %v1233
        %vm2007 = vcmp.le.f32.partialorder %v2006, 0.7853982
        %vm2008 = vcmp.lt.s32.totalorder %v1233, 0
        %v2009 = vand.u32 %v1233, 2139095040
        %v2010 = vshrl.u32 %v2009, 23
        %v2011 = vsub.s32 %v2010, 127
        %v2012 = vand.u32 2147483647, %v1233
        %v2013 = vand.u32 %v2012, 8388607
        %v2014 = vor.u32 %v2013, 8388608
        %v2015 = vsub.s32 0, %v2014
        %v2016 = vadd.s32 %v2011, 1
        %vm2017 = vcmp.gt.s32.totalorder %v2016, 0
        %v2018 = vsel %vm2017, %v2016, 0
        %v2019 = vshrl.u32 %v2018, 5
        %v2020 = vand.u32 %v2018, 31
        %v2021 = vsub.s32 32, %v2020
        %v2022 = vshrl.u32 683565275, %v2021
        %v2023 = vshll.u32 683565275, %v2020
        %v2024 = vshrl.u32 2475754826, %v2021
        %v2025 = vor.u32 %v2023, %v2024
        %v2026 = vshll.u32 2475754826, %v2020
        %v2027 = vshrl.u32 2131351028, %v2021
        %v2028 = vor.u32 %v2026, %v2027
        %v2029 = vshll.u32 2131351028, %v2020
        %v2030 = vshrl.u32 2102212464, %v2021
        %v2031 = vor.u32 %v2029, %v2030
        %v2032 = vshll.u32 2102212464, %v2020
        %v2033 = vshrl.u32 920167782, %v2021
        %v2034 = vor.u32 %v2032, %v2033
        %v2035 = vshll.u32 920167782, %v2020
        %v2036 = vshrl.u32 1326507024, %v2021
        %v2037 = vor.u32 %v2035, %v2036
        %vm2038 = vcmp.lt.s32.totalorder %v2019, 1
        %vm2039 = vcmp.lt.s32.totalorder %v2019, 2
        %vm2040 = vcmp.lt.s32.totalorder %v2019, 3
        %vm2041 = vcmp.lt.s32.totalorder %v2019, 4
        %v2042 = vsel %vm2038, %v2022, %v2025
        %v2043 = vsel %vm2041, %v2031, 2102212464
        %v2044 = vsel %vm2040, %v2028, %v2043
        %v2045 = vsel %vm2039, %v2042, %v2044
        %v2046 = vsel %vm2038, %v2025, %v2028
        %v2047 = vsel %vm2041, %v2034, 920167782
        %v2048 = vsel %vm2040, %v2031, %v2047
        %v2049 = vsel %vm2039, %v2046, %v2048
        %v2050 = vsel %vm2038, %v2028, %v2031
        %v2051 = vsel %vm2041, %v2037, 1326507024
        %v2052 = vsel %vm2040, %v2034, %v2051
        %v2053 = vsel %vm2039, %v2050, %v2052
        %v2054 = vshll.u32 %v2014, 8
        %v2055 = vmul.u32.u64.compose %v2054, %v2053
        %v2056 = vextract.low.u32 %v2055
        %v2057 = vextract.high.u32 %v2055
        %v2058 = vmul.u32.u64.compose %v2054, %v2049
        %v2059 = vextract.low.u32 %v2058
        %v2060 = vextract.high.u32 %v2058
        %v2061 = vmul.u32 %v2054, %v2045
        %v2062 = vadd.s32 %v2057, %v2059
        %vm2063 = vc.u32 %v2057, %v2059
        %v2064 = vadd.s32 %v2060, 1
        %v2065 = vsel %vm2063, %v2064, %v2060
        %v2066 = vadd.s32 %v2061, %v2065
        %v2067 = vadd.s32 %v2066, 536870912
        %v2068 = vshrl.u32 %v2067, 30
        %v2069 = vshll.u32 %v2068, 30
        %v2070 = vsub.s32 %v2066, %v2069
        %vm2071 = vcmp.lt.s32.totalorder %v2070, 0
        %v2072 = vsub.s32 0, %v2070
        %v2073 = vsel %vm2071, %v2072, %v2070
        %v2074 = vclz %v2073
        %v2075 = vsub.s32 %v2074, 2
        %vm2076 = vcmp.gt.s32.totalorder 0, %v2075
        %v2077 = vsel %vm2076, 0, %v2075
        %v2078 = vsub.s32 32, %v2077
        %v2079 = vshll.u32 %v2070, %v2077
        %v2080 = vshrl.u32 %v2062, %v2078
        %v2081 = vor.u32 %v2079, %v2080
        %v2082 = vsub.s32 4294967266, %v2077
        %v2083 = vadd.s32 %v2082, 127
        %v2084 = vshll.u32 %v2083, 23
        %v2085 = vor.u32 4788187, %v2084
        %v2086 = vand.u32 2147483647, %v2085
        %v2088 = vcvt.s32.f32 %v2081
        %v2089 = vmul.f32 %v2088, %v2086
        %v2090 = vxor.u32 %v2089, 2147483648
        %v2091 = vsel %vm2008, %v2090, %v2089
        %v2092 = vsub.s32 4, %v2068
        %v2093 = vsel %vm2008, %v2092, %v2068
        %v2094 = vsel %vm2007, %v1233, %v2091
        %v2095 = vsel %vm2007, 0, %v2093
        %v2096 = vcosq.f32.pop %v2094
        %v2097 = vsinq.f32.pop %v2094
        %vm2098 = vweird.f32 %v1233
        %v2099 = vadd.s32 %v2095, 3
        %v2100 = vand.u32 %v2099, 3
        %vm2101 = vcmp.lt.s32.totalorder %v2100, 2
        %vm2102 = vcmp.eq.s32.totalorder %v2100, 0
        %v2103 = vxor.u32 %v2097, 2147483648
        %v2104 = vsel %vm2102, %v2096, %v2103
        %vm2105 = vcmp.eq.s32.totalorder %v2100, 2
        %v2106 = vxor.u32 %v2096, 2147483648
        %v2107 = vsel %vm2105, %v2106, %v2097
        %v2108 = vsel %vm2101, %v2104, %v2107
        %v2109 = vsel %vm2098, nan, %v2108
        %v2110 = vand.u32 2147483647, %v1691
        %vm2111 = vcmp.le.f32.partialorder %v2110, 0.7853982
        %vm2112 = vcmp.lt.s32.totalorder %v1691, 0
        %v2113 = vand.u32 %v1691, 2139095040
        %v2114 = vshrl.u32 %v2113, 23
        %v2115 = vsub.s32 %v2114, 127
        %v2116 = vand.u32 2147483647, %v1691
        %v2117 = vand.u32 %v2116, 8388607
        %v2118 = vor.u32 %v2117, 8388608
        %v2119 = vsub.s32 0, %v2118
        %v2120 = vadd.s32 %v2115, 1
        %vm2121 = vcmp.gt.s32.totalorder %v2120, 0
        %v2122 = vsel %vm2121, %v2120, 0
        %v2123 = vshrl.u32 %v2122, 5
        %v2124 = vand.u32 %v2122, 31
        %v2125 = vsub.s32 32, %v2124
        %v2126 = vshrl.u32 683565275, %v2125
        %v2127 = vshll.u32 683565275, %v2124
        %v2128 = vshrl.u32 2475754826, %v2125
        %v2129 = vor.u32 %v2127, %v2128
        %v2130 = vshll.u32 2475754826, %v2124
        %v2131 = vshrl.u32 2131351028, %v2125
        %v2132 = vor.u32 %v2130, %v2131
        %v2133 = vshll.u32 2131351028, %v2124
        %v2134 = vshrl.u32 2102212464, %v2125
        %v2135 = vor.u32 %v2133, %v2134
        %v2136 = vshll.u32 2102212464, %v2124
        %v2137 = vshrl.u32 920167782, %v2125
        %v2138 = vor.u32 %v2136, %v2137
        %v2139 = vshll.u32 920167782, %v2124
        %v2140 = vshrl.u32 1326507024, %v2125
        %v2141 = vor.u32 %v2139, %v2140
        %vm2142 = vcmp.lt.s32.totalorder %v2123, 1
        %vm2143 = vcmp.lt.s32.totalorder %v2123, 2
        %vm2144 = vcmp.lt.s32.totalorder %v2123, 3
        %vm2145 = vcmp.lt.s32.totalorder %v2123, 4
        %v2146 = vsel %vm2142, %v2126, %v2129
        %v2147 = vsel %vm2145, %v2135, 2102212464
        %v2148 = vsel %vm2144, %v2132, %v2147
        %v2149 = vsel %vm2143, %v2146, %v2148
        %v2150 = vsel %vm2142, %v2129, %v2132
        %v2151 = vsel %vm2145, %v2138, 920167782
        %v2152 = vsel %vm2144, %v2135, %v2151
        %v2153 = vsel %vm2143, %v2150, %v2152
        %v2154 = vsel %vm2142, %v2132, %v2135
        %v2155 = vsel %vm2145, %v2141, 1326507024
        %v2156 = vsel %vm2144, %v2138, %v2155
        %v2157 = vsel %vm2143, %v2154, %v2156
        %v2158 = vshll.u32 %v2118, 8
        %v2159 = vmul.u32.u64.compose %v2158, %v2157
        %v2160 = vextract.low.u32 %v2159
        %v2161 = vextract.high.u32 %v2159
        %v2162 = vmul.u32.u64.compose %v2158, %v2153
        %v2163 = vextract.low.u32 %v2162
        %v2164 = vextract.high.u32 %v2162
        %v2165 = vmul.u32 %v2158, %v2149
        %v2166 = vadd.s32 %v2161, %v2163
        %vm2167 = vc.u32 %v2161, %v2163
        %v2168 = vadd.s32 %v2164, 1
        %v2169 = vsel %vm2167, %v2168, %v2164
        %v2170 = vadd.s32 %v2165, %v2169
        %v2171 = vadd.s32 %v2170, 536870912
        %v2172 = vshrl.u32 %v2171, 30
        %v2173 = vshll.u32 %v2172, 30
        %v2174 = vsub.s32 %v2170, %v2173
        %vm2175 = vcmp.lt.s32.totalorder %v2174, 0
        %v2176 = vsub.s32 0, %v2174
        %v2177 = vsel %vm2175, %v2176, %v2174
        %v2178 = vclz %v2177
        %v2179 = vsub.s32 %v2178, 2
        %vm2180 = vcmp.gt.s32.totalorder 0, %v2179
        %v2181 = vsel %vm2180, 0, %v2179
        %v2182 = vsub.s32 32, %v2181
        %v2183 = vshll.u32 %v2174, %v2181
        %v2184 = vshrl.u32 %v2166, %v2182
        %v2185 = vor.u32 %v2183, %v2184
        %v2186 = vsub.s32 4294967266, %v2181
        %v2187 = vadd.s32 %v2186, 127
        %v2188 = vshll.u32 %v2187, 23
        %v2189 = vor.u32 4788187, %v2188
        %v2190 = vand.u32 2147483647, %v2189
        %v2192 = vcvt.s32.f32 %v2185
        %v2193 = vmul.f32 %v2192, %v2190
        %v2194 = vxor.u32 %v2193, 2147483648
        %v2195 = vsel %vm2112, %v2194, %v2193
        %v2196 = vsub.s32 4, %v2172
        %v2197 = vsel %vm2112, %v2196, %v2172
        %v2198 = vsel %vm2111, %v1691, %v2195
        %v2199 = vsel %vm2111, 0, %v2197
        %v2200 = vcosq.f32.pop %v2198
        %v2201 = vsinq.f32.pop %v2198
        %vm2202 = vweird.f32 %v1691
        %v2203 = vadd.s32 %v2199, 3
        %v2204 = vand.u32 %v2203, 3
        %vm2205 = vcmp.lt.s32.totalorder %v2204, 2
        %vm2206 = vcmp.eq.s32.totalorder %v2204, 0
        %v2207 = vxor.u32 %v2201, 2147483648
        %v2208 = vsel %vm2206, %v2200, %v2207
        %vm2209 = vcmp.eq.s32.totalorder %v2204, 2
        %v2210 = vxor.u32 %v2200, 2147483648
        %v2211 = vsel %vm2209, %v2210, %v2201
        %v2212 = vsel %vm2205, %v2208, %v2211
        %v2213 = vsel %vm2202, nan, %v2212
        %2214 = vst [vmem:[%s210] sm:$0xff] %v1797
        %2215 = vst [vmem:[%s210 + $0x8] sm:$0xff] %v1901
        %2216 = vst [vmem:[%s210 + $0x10] sm:$0xff] %v2005
        %2217 = vst [vmem:[%s210 + $0x18] sm:$0xff] %v2109
        %2218 = vst [vmem:[%s210 + $0x20] sm:$0xff] %v2213
        %s2219 = sand.u32 %s95, 1
        %s2220 = scalar_lea.sflag [#allocation4], %s2219
        %s2221 = sand.u32 %s95, 1
        %s2222 = smul.addr %s2221, 40
        %s2223 = scalar_lea.vmem [#allocation8], %s2222
        // Predicated region
        $region45: #{tpu_custom_call.1} parent=31 // pred_check
          %p2224 = pneg %p105
        $region46: #{tpu_custom_call.1} parent=31 // pred_check_branch
          %2226 = sbr.rel (%p2224) target = $region48
        $region47: #{tpu_custom_call.1} parent=31 // pred_region
          %s2228 = ssub.s32 640, 640
          %2229 = vsyncadd %s2220, %s2228
          %s2230 = smul.addr %s19, 5
          %s2231 = smul.addr %s2230, 128
          %s2232 = scalar_lea.hbm %s3, %s2231
          %s2234 = sshll.u32 %s2223, 4
          %s2235 = int_to_ptr.vmem [resolvable:$true] %s2234
          %2237 = dma.vmem_to_hbm [thread:$0]  %s2235, 640, %s2232, %s2220
        $region48: #{tpu_custom_call.1} parent=31 // pred_fallthru
          _
      $region32: #{tpu_custom_call.1} parent=5 // pred_fallthru
        _
      %p2238 = scmp.le.s32.totalorder 2, %s14
      // Predicated region
      $region49: #{tpu_custom_call.1} parent=5 // pred_check
        %p2239 = pneg %p2238
      $region50: #{tpu_custom_call.1} parent=5 // pred_check_branch
        %2241 = sbr.rel (%p2239) target = $region52
      $region51: #{tpu_custom_call.1} parent=5 // pred_region
        %s2242 = ssub.s32 %s14, 2
        // Predicated region
        $region53: #{tpu_custom_call.1} parent=51 // pred_check
          %p2243 = pneg %p111
        $region54: #{tpu_custom_call.1} parent=51 // pred_check_branch
          %2245 = sbr.rel (%p2243) target = $region56
        $region55: #{tpu_custom_call.1} parent=51 // pred_region
          %s2246 = sand.u32 %s96, 1
          %s2247 = scalar_lea.sflag [#allocation4], %s2246
          %s2248 = sand.u32 %s96, 1
          %s2249 = smul.addr %s2248, 40
          %s2250 = scalar_lea.vmem [#allocation8], %s2249
          %2251 = dma.done %s2247, 640
        $region56: #{tpu_custom_call.1} parent=51 // pred_fallthru
          _
      $region52: #{tpu_custom_call.1} parent=5 // pred_fallthru
        _
    $region6: #{tpu_custom_call.1} parent=1 // loop_footer
      %s18 = sadd.s32 1, %s14
    $region7: #{tpu_custom_call.1} parent=1 // loop_footer_branch
      %13 = sbr.rel target = $region3
    $region8: #{tpu_custom_call.1} parent=1 // loop_exit
      _
    %2252 = vsyncpa [#allocation3], 1
    %s2253 = scalar_lea.sflag [#allocation3], 1
    %2254 = vsyncpa %s2253, 1
    %2255 = vsyncpa [#allocation6], 1
    %2256 = vsyncpa [#allocation4], 1
    %s2257 = scalar_lea.sflag [#allocation4], 1
    %2258 = vsyncpa %s2257, 1

</llo_original>
